<compile_context>
chip_gen: v7x
topology: tpu7x:2x2x1
jax: 0.10.0
libtpu: 0.0.40
codegen_flags: <defaults>
</compile_context>

<pallas_src>
import functools

import jax
import jax.numpy as jnp
from jax import lax
from jax.experimental import pallas as pl
from jax.experimental.pallas import tpu as pltpu


def _round_up(n, m):
    return ((n + m - 1) // m) * m


def _pad_axis(a, axis, new_size):
    pad = [(0, 0)] * a.ndim
    pad[axis] = (0, new_size - a.shape[axis])
    return jnp.pad(a, pad)


def _pad_gate_blocks(a, H, Hp, axis=0):
    """`a` holds the 3 stacked GRU gate blocks (r, z, n), each of size H along
    `axis`; zero-pad each block to Hp so every gate starts on a 128-lane boundary."""
    blocks = [lax.slice_in_dim(a, g * H, (g + 1) * H, axis=axis) for g in range(3)]
    return jnp.concatenate([_pad_axis(b, axis, Hp) for b in blocks], axis=axis)


def _gru_encoder_kernel(x_ref, wih_ref, whh_ref, bih_ref, bhhn_ref,
                        whead_ref, bhead_ref, out_ref, h_scr, gx_scr,
                        *, T, Tc, Bg, Hp, unroll):
    t_idx = pl.program_id(1)

    @pl.when(t_idx == 0)
    def _():
        h_scr[...] = jnp.zeros_like(h_scr)

    # ---- hoisted per-chunk input projection (off the serial critical path) ----
    # x block: (1, 1, Tc*Bg, D) -> (Tc*Bg, D);  wih: (D, 3Hp);  bih: (1, 3Hp)
    gx_scr[...] = (jnp.dot(x_ref[0, 0], wih_ref[...],
                           preferred_element_type=jnp.float32)
                   + bih_ref[...])

    whh = whh_ref[...]          # (Hp, 3Hp) fp32, hoisted out of the loop
    bhh_n = bhhn_ref[...]       # (1, Hp): only the n-gate bias stays per-step
    needs_mask = (T % Tc) != 0  # static: only the last chunk has padded steps

    def step(tl, h):            # h: (Bg, Hp) fp32 carry
        row = pl.multiple_of(tl * Bg, Bg)
        gx_t = gx_scr[pl.ds(row, Bg), :]           # (Bg, 3Hp), sublane-aligned
        gh = jnp.dot(h, whh, preferred_element_type=jnp.float32)
        # PyTorch GRU gate order [r, z, n]; slices at 0 / 128k lane boundaries.
        r = jax.nn.sigmoid(gx_t[:, :Hp] + gh[:, :Hp])
        z = jax.nn.sigmoid(gx_t[:, Hp:2 * Hp] + gh[:, Hp:2 * Hp])
        n = jnp.tanh(gx_t[:, 2 * Hp:] + r * (gh[:, 2 * Hp:] + bhh_n))
        h_new = (1.0 - z) * n + z * h
        if needs_mask:
            h_new = jnp.where(t_idx * Tc + tl < T, h_new, h)
        return h_new

    h_scr[...] = lax.fori_loop(0, Tc, step, h_scr[...], unroll=unroll)

    # ---- fused mu/logvar head: one matmul, one lane-dense store ----
    @pl.when(t_idx == pl.num_programs(1) - 1)
    def _():
        h_head = h_scr[...].astype(whead_ref.dtype)
        out_ref[...] = (jnp.dot(h_head, whead_ref[...],
                                preferred_element_type=jnp.float32)
                        + bhead_ref[...])


@functools.partial(jax.jit, static_argnames=("matmul_dtype",))
def gencoder_forward(x, w_ih, w_hh, b_ih, b_hh, w_mu, b_mu, w_lv, b_lv,
                     *, matmul_dtype=jnp.bfloat16):
    """x: (B, T, D) batch-first.  Parameters in PyTorch layout:
         w_ih: (3H, D), w_hh: (3H, H), b_ih/b_hh: (3H,),
         w_mu/w_lv: (L, H), b_mu/b_lv: (L,).
       Returns (mu, logvar), each (B, L)."""
    f32 = jnp.float32
    x = x.astype(f32)
    B, T, D = x.shape
    H = w_hh.shape[1]
    L = w_mu.shape[0]

    # ---- tiling ----
    BG_CAP = 64                               # batch-group rows per grid step
    TC_MAX = 16                               # timesteps projected per chunk
    Bp = _round_up(max(B, 8), 8)
    Bg = Bp if Bp <= BG_CAP else BG_CAP
    Bp = _round_up(Bp, Bg)
    nB = Bp // Bg
    Tc = min(T, TC_MAX)
    nT = -(-T // Tc)
    Tp = nT * Tc

    Hp = _round_up(H, 128)                    # lane-aligned per-gate width
    Gp = 3 * Hp
    Op = _round_up(2 * L, 128)                # lane-dense fused head width

    # ---- GRU params: per-gate pad to Hp, transpose for right-multiplication ----
    wih_t = _pad_gate_blocks(w_ih.astype(f32), H, Hp, axis=0).T          # (D, 3Hp)
    wih_t = wih_t.astype(matmul_dtype)
    whh_t = _pad_axis(_pad_gate_blocks(w_hh.astype(f32), H, Hp, axis=0),
                      1, Hp).T                                           # (Hp, 3Hp) fp32

    # Fold r/z parts of b_hh into b_ih (only b_hh_n must stay inside the r-gate).
    b_ih = b_ih.astype(f32)
    b_hh = b_hh.astype(f32)
    b_fold = jnp.concatenate([b_ih[:H] + b_hh[:H],
                              b_ih[H:2 * H] + b_hh[H:2 * H],
                              b_ih[2 * H:]], axis=0)
    bih_p = _pad_gate_blocks(b_fold, H, Hp, axis=0).reshape(1, Gp)
    bhhn_p = _pad_axis(b_hh[2 * H:], 0, Hp).reshape(1, Hp)

    # ---- fused head: [mu | logvar | zero-pad] along the lane dim ----
    w_head = jnp.concatenate([w_mu, w_lv], axis=0).astype(f32)           # (2L, H)
    w_head = _pad_axis(_pad_axis(w_head, 0, Op), 1, Hp).T                # (Hp, Op)
    w_head = w_head.astype(matmul_dtype)
    b_head = _pad_axis(jnp.concatenate([b_mu, b_lv], axis=0).astype(f32),
                       0, Op).reshape(1, Op)                             # (1, Op)

    # ---- x: time-major, padded, regrouped so each (batch-group, time-chunk)
    #      grid point reads one contiguous lane-dense (Tc*Bg, D) block ----
    # TODO(synk): fold this transpose/regroup into the x BlockSpec/index_map to
    #             skip the extra HBM pass over x.
    x_tm = jnp.transpose(x, (1, 0, 2))                   # (T, B, D)
    x_tm = _pad_axis(_pad_axis(x_tm, 1, Bp), 0, Tp)      # (Tp, Bp, D) zeros masked
    x_blk = x_tm.reshape(nT, Tc, nB, Bg, D)
    x_blk = jnp.transpose(x_blk, (2, 0, 1, 3, 4)).reshape(nB, nT, Tc * Bg, D)
    x_blk = x_blk.astype(matmul_dtype)

    unroll = min(Tc, 8)
    kernel = functools.partial(_gru_encoder_kernel, T=T, Tc=Tc, Bg=Bg, Hp=Hp,
                               unroll=unroll)

    itemsize = jnp.dtype(matmul_dtype).itemsize
    # Scoped-VMEM budget: pipelined x block + (double-buffered) weights + gx / h
    # scratch + output, with 2x headroom.  Independent of T by construction.
    vmem_bytes = (2 * Tc * Bg * D * itemsize
                  + 2 * (D * Gp * itemsize + Hp * Gp * 4 + Gp * 4 + Hp * 4
                         + Hp * Op * itemsize + Op * 4)
                  + 2 * Bg * Op * 4
                  + Tc * Bg * Gp * 4 + Bg * Hp * 4)
    vmem_limit = int(min(max(2 * vmem_bytes + (1 << 20), 4 << 20), 64 << 20))

    cost = pl.CostEstimate(
        flops=2 * T * Bp * D * Gp + 2 * T * Bp * Hp * Gp + 2 * Bp * Hp * Op,
        transcendentals=T * Bp * Gp,
        bytes_accessed=(x_blk.size * itemsize + wih_t.size * itemsize
                        + whh_t.size * 4 + w_head.size * itemsize
                        + (Gp + Hp + Op) * 4 + Bp * Op * 4),
    )

    grid_spec = pltpu.PrefetchScalarGridSpec(
        num_scalar_prefetch=0,
        grid=(nB, nT),
        in_specs=[
            pl.BlockSpec((1, 1, Tc * Bg, D), lambda b, t: (b, t, 0, 0)),  # x chunk
            pl.BlockSpec((D, Gp), lambda b, t: (0, 0)),        # W_ih^T (gate-padded)
            pl.BlockSpec((Hp, Gp), lambda b, t: (0, 0)),       # W_hh^T (gate-padded)
            pl.BlockSpec((1, Gp), lambda b, t: (0, 0)),        # folded b_ih
            pl.BlockSpec((1, Hp), lambda b, t: (0, 0)),        # b_hh (n gate only)
            pl.BlockSpec((Hp, Op), lambda b, t: (0, 0)),       # fused head weight
            pl.BlockSpec((1, Op), lambda b, t: (0, 0)),        # fused head bias
        ],
        out_specs=pl.BlockSpec((Bg, Op), lambda b, t: (b, 0)),  # [mu | logvar | pad]
        scratch_shapes=[
            pltpu.VMEM((Bg, Hp), jnp.float32),        # h carry across time chunks
            pltpu.VMEM((Tc * Bg, Gp), jnp.float32),   # per-chunk hoisted gx
        ],
    )

    out = pl.pallas_call(
        kernel,
        out_shape=jax.ShapeDtypeStruct((Bp, Op), jnp.float32),
        grid_spec=grid_spec,
        compiler_params=pltpu.CompilerParams(
            dimension_semantics=("parallel", "arbitrary"),
            vmem_limit_bytes=vmem_limit),
        cost_estimate=cost,
    )(x_blk, wih_t, whh_t, bih_p, bhhn_p, w_head, b_head)

    mu = out[:B, :L]
    logvar = out[:B, L:2 * L]
    return mu, logvar


def _reference_forward(x, w_ih, w_hh, b_ih, b_hh, w_mu, b_mu, w_lv, b_lv):
    """Pure-JAX reference mirroring torch.nn.GRU(batch_first=True) + Linear heads."""
    B = x.shape[0]
    H = w_hh.shape[1]
    wih_t, whh_t = w_ih.T, w_hh.T
    h0 = jnp.zeros((B, H), jnp.float32)

    def step(h, x_t):
        gx = x_t @ wih_t + b_ih
        gh = h @ whh_t + b_hh
        r = jax.nn.sigmoid(gx[:, :H] + gh[:, :H])
        z = jax.nn.sigmoid(gx[:, H:2 * H] + gh[:, H:2 * H])
        n = jnp.tanh(gx[:, 2 * H:] + r * gh[:, 2 * H:])
        return (1.0 - z) * n + z * h, None

    h_final, _ = jax.lax.scan(step, h0, jnp.transpose(x, (1, 0, 2)))
    mu = h_final @ w_mu.T + b_mu
    logvar = h_final @ w_lv.T + b_lv
    return mu, logvar


def _make_params(key, T, B, D, H, L):
    ks = jax.random.split(key, 9)
    bound = 1.0 / float(H) ** 0.5
    x = jax.random.normal(ks[0], (B, T, D), jnp.float32)
    w_ih = jax.random.uniform(ks[1], (3 * H, D), jnp.float32, -bound, bound)
    w_hh = jax.random.uniform(ks[2], (3 * H, H), jnp.float32, -bound, bound)
    b_ih = jax.random.uniform(ks[3], (3 * H,), jnp.float32, -bound, bound)
    b_hh = jax.random.uniform(ks[4], (3 * H,), jnp.float32, -bound, bound)
    w_mu = jax.random.uniform(ks[5], (L, H), jnp.float32, -bound, bound)
    b_mu = jax.random.uniform(ks[6], (L,), jnp.float32, -bound, bound)
    w_lv = jax.random.uniform(ks[7], (L, H), jnp.float32, -bound, bound)
    b_lv = jax.random.uniform(ks[8], (L,), jnp.float32, -bound, bound)
    return (x, w_ih, w_hh, b_ih, b_hh, w_mu, b_mu, w_lv, b_lv)


if __name__ == "__main__":
    key = jax.random.PRNGKey(0)
    k1, k2 = jax.random.split(key)

    # --- small shapes consistent with GEncoder(seq_len, rule_dim, hidden_dim, latent_dim)
    B, T, D, H, L = 2, 8, 16, 32, 32
    args = _make_params(k1, T, B, D, H, L)

    # Default (bf16 MXU operands for projection/head, fp32 recurrence & gates).
    mu, logvar = gencoder_forward(*args)
    jax.block_until_ready((mu, logvar))
    mu_ref, lv_ref = _reference_forward(*args)
    assert mu.shape == (B, L) and logvar.shape == (B, L)
    # bf16 matmul operands -> deliberately loosened tolerance (perf-review caveat).
    assert jnp.allclose(mu, mu_ref, atol=2e-2, rtol=2e-2)
    assert jnp.allclose(logvar, lv_ref, atol=2e-2, rtol=2e-2)

    # Exact fp32 MXU path still matches the reference tightly.
    mu32, lv32 = gencoder_forward(*args, matmul_dtype=jnp.float32)
    jax.block_until_ready((mu32, lv32))
    assert jnp.allclose(mu32, mu_ref, atol=1e-5, rtol=1e-5)
    assert jnp.allclose(lv32, lv_ref, atol=1e-5, rtol=1e-5)

    # Second small config: T=30 exercises multiple time chunks + the masked
    # remainder steps + odd B/D/L padding (checked on the exact fp32 path).
    B2, T2, D2, H2, L2 = 3, 30, 12, 32, 24
    args2 = _make_params(k2, T2, B2, D2, H2, L2)
    mu2, lv2 = gencoder_forward(*args2, matmul_dtype=jnp.float32)
    jax.block_until_ready((mu2, lv2))
    mu2_ref, lv2_ref = _reference_forward(*args2)
    assert mu2.shape == (B2, L2) and lv2.shape == (B2, L2)
    assert jnp.allclose(mu2, mu2_ref, atol=1e-5, rtol=1e-5)
    assert jnp.allclose(lv2, lv2_ref, atol=1e-5, rtol=1e-5)

    print("KERNEL_OK")
</pallas_src>

<mosaic_0001>
module attributes {stable_mosaic.version = 11 : i64} {
  func.func @_gru_encoder_kernel(%arg0: i32, %arg1: i32, %arg2: memref<1x1x64x16xbf16, #tpu.memory_space<vmem>>, %arg3: memref<16x384xbf16, #tpu.memory_space<vmem>>, %arg4: memref<128x384xf32, #tpu.memory_space<vmem>>, %arg5: memref<1x384xf32, #tpu.memory_space<vmem>>, %arg6: memref<1x128xf32, #tpu.memory_space<vmem>>, %arg7: memref<128x128xbf16, #tpu.memory_space<vmem>>, %arg8: memref<1x128xf32, #tpu.memory_space<vmem>>, %arg9: memref<8x128xf32, #tpu.memory_space<vmem>>, %arg10: memref<8x128xf32, #tpu.memory_space<vmem>>, %arg11: memref<64x384xf32, #tpu.memory_space<vmem>>) attributes {dimension_semantics = [#tpu.dimension_semantics<parallel>, #tpu.dimension_semantics<arbitrary>], iteration_bounds = array<i64: 1, 1>, scalar_prefetch = 0 : i64, scratch_operands = 2 : i64, tpu.core_type = #tpu.core_type<tc>, window_params = [{transform_indices = @transform_0, window_bounds = array<i64: 1, 1, 64, 16>}, {pipeline_mode = #tpu.pipeline_mode<synchronous>, transform_indices = @transform_1, window_bounds = array<i64: 16, 384>}, {pipeline_mode = #tpu.pipeline_mode<synchronous>, transform_indices = @transform_2, window_bounds = array<i64: 128, 384>}, {pipeline_mode = #tpu.pipeline_mode<synchronous>, transform_indices = @transform_3, window_bounds = array<i64: 1, 384>}, {pipeline_mode = #tpu.pipeline_mode<synchronous>, transform_indices = @transform_4, window_bounds = array<i64: 1, 128>}, {pipeline_mode = #tpu.pipeline_mode<synchronous>, transform_indices = @transform_5, window_bounds = array<i64: 128, 128>}, {pipeline_mode = #tpu.pipeline_mode<synchronous>, transform_indices = @transform_6, window_bounds = array<i64: 1, 128>}, {transform_indices = @transform_7, window_bounds = array<i64: 8, 128>}]} {
    %c0_i32 = arith.constant 0 : i32
    %0 = arith.cmpi eq, %arg1, %c0_i32 : i32
    %1 = arith.extui %0 : i1 to i32
    %c0_i32_0 = arith.constant 0 : i32
    %2 = arith.cmpi ne, %1, %c0_i32_0 : i32
    scf.if %2 {
      %cst_69 = arith.constant 0.000000e+00 : f32
      %282 = vector.broadcast %cst_69 : f32 to vector<8x128xf32>
      %c0_70 = arith.constant 0 : index
      %c0_71 = arith.constant 0 : index
      %283 = vector.load %arg10[%c0_70, %c0_71] : memref<8x128xf32, #tpu.memory_space<vmem>>, vector<8x128xf32>
      tpu.vector_store %arg10[%c0_70, %c0_71], %282 {strides = array<i32>} : memref<8x128xf32, #tpu.memory_space<vmem>>, vector<8x128xf32>,
    } else {
    }
    %c0 = arith.constant 0 : index
    %c0_1 = arith.constant 0 : index
    %c0_2 = arith.constant 0 : index
    %c0_3 = arith.constant 0 : index
    %3 = vector.load %arg2[%c0, %c0_1, %c0_2, %c0_3] : memref<1x1x64x16xbf16, #tpu.memory_space<vmem>>, vector<1x1x64x16xbf16>
    %4 = vector.shape_cast %3 : vector<1x1x64x16xbf16> to vector<64x16xbf16>
    %c0_4 = arith.constant 0 : index
    %c0_5 = arith.constant 0 : index
    %5 = vector.load %arg3[%c0_4, %c0_5] : memref<16x384xbf16, #tpu.memory_space<vmem>>, vector<16x384xbf16>
    %cst = arith.constant dense<0.000000e+00> : vector<64x384xf32>
    %6 = tpu.matmul %4, %5, %cst {dimension_numbers = #tpu.dot_dimension_numbers<[1], [0], [0], [1], [0, 0, 1, 1], [], []>} : vector<64x16xbf16>, vector<16x384xbf16>, vector<64x384xf32> -> vector<64x384xf32>
    %c0_6 = arith.constant 0 : index
    %c0_7 = arith.constant 0 : index
    %7 = vector.load %arg5[%c0_6, %c0_7] : memref<1x384xf32, #tpu.memory_space<vmem>>, vector<1x384xf32>
    %8 = vector.broadcast %7 : vector<1x384xf32> to vector<64x384xf32>
    %9 = arith.addf %6, %8 : vector<64x384xf32>
    %c0_8 = arith.constant 0 : index
    %c0_9 = arith.constant 0 : index
    %10 = vector.load %arg11[%c0_8, %c0_9] : memref<64x384xf32, #tpu.memory_space<vmem>>, vector<64x384xf32>
    tpu.vector_store %arg11[%c0_8, %c0_9], %9 {strides = array<i32>} : memref<64x384xf32, #tpu.memory_space<vmem>>, vector<64x384xf32>,
    %c0_10 = arith.constant 0 : index
    %c0_11 = arith.constant 0 : index
    %11 = vector.load %arg4[%c0_10, %c0_11] : memref<128x384xf32, #tpu.memory_space<vmem>>, vector<128x384xf32>
    %c0_12 = arith.constant 0 : index
    %c0_13 = arith.constant 0 : index
    %12 = vector.load %arg6[%c0_12, %c0_13] : memref<1x128xf32, #tpu.memory_space<vmem>>, vector<1x128xf32>
    %c0_14 = arith.constant 0 : index
    %c0_15 = arith.constant 0 : index
    %13 = vector.load %arg10[%c0_14, %c0_15] : memref<8x128xf32, #tpu.memory_space<vmem>>, vector<8x128xf32>
    %c0_i32_16 = arith.constant 0 : i32
    %c8_i32 = arith.constant 8 : i32
    %14 = arith.muli %c0_i32_16, %c8_i32 : i32
    %15 = tpu.assume_multiple %14, 8 : i32
    %16 = arith.index_cast %15 : i32 to index
    %c0_17 = arith.constant 0 : index
    %17 = vector.load %arg11[%16, %c0_17] : memref<64x384xf32, #tpu.memory_space<vmem>>, vector<8x384xf32>
    %cst_18 = arith.constant dense<0.000000e+00> : vector<8x384xf32>
    %18 = tpu.matmul %13, %11, %cst_18 {dimension_numbers = #tpu.dot_dimension_numbers<[1], [0], [0], [1], [0, 0, 1, 1], [], []>} : vector<8x128xf32>, vector<128x384xf32>, vector<8x384xf32> -> vector<8x384xf32>
    %19 = vector.extract_strided_slice %17 {offsets = [0, 0], sizes = [8, 128], strides = [1, 1]} : vector<8x384xf32> to vector<8x128xf32>
    %20 = vector.extract_strided_slice %18 {offsets = [0, 0], sizes = [8, 128], strides = [1, 1]} : vector<8x384xf32> to vector<8x128xf32>
    %21 = arith.addf %19, %20 : vector<8x128xf32>
    %22 = arith.negf %21 : vector<8x128xf32>
    %23 = math.exp %22 : vector<8x128xf32>
    %cst_19 = arith.constant 1.000000e+00 : f32
    %24 = vector.broadcast %cst_19 : f32 to vector<8x128xf32>
    %25 = arith.addf %24, %23 : vector<8x128xf32>
    %26 = arith.divf %24, %25 : vector<8x128xf32>
    %27 = vector.extract_strided_slice %17 {offsets = [0, 128], sizes = [8, 128], strides = [1, 1]} : vector<8x384xf32> to vector<8x128xf32>
    %28 = vector.extract_strided_slice %18 {offsets = [0, 128], sizes = [8, 128], strides = [1, 1]} : vector<8x384xf32> to vector<8x128xf32>
    %29 = arith.addf %27, %28 : vector<8x128xf32>
    %30 = arith.negf %29 : vector<8x128xf32>
    %31 = math.exp %30 : vector<8x128xf32>
    %cst_20 = arith.constant 1.000000e+00 : f32
    %32 = vector.broadcast %cst_20 : f32 to vector<8x128xf32>
    %33 = arith.addf %32, %31 : vector<8x128xf32>
    %34 = arith.divf %32, %33 : vector<8x128xf32>
    %35 = vector.extract_strided_slice %17 {offsets = [0, 256], sizes = [8, 128], strides = [1, 1]} : vector<8x384xf32> to vector<8x128xf32>
    %36 = vector.extract_strided_slice %18 {offsets = [0, 256], sizes = [8, 128], strides = [1, 1]} : vector<8x384xf32> to vector<8x128xf32>
    %37 = vector.broadcast %12 : vector<1x128xf32> to vector<8x128xf32>
    %38 = arith.addf %36, %37 : vector<8x128xf32>
    %39 = arith.mulf %26, %38 : vector<8x128xf32>
    %40 = arith.addf %35, %39 : vector<8x128xf32>
    %41 = math.tanh %40 : vector<8x128xf32>
    %cst_21 = arith.constant 1.000000e+00 : f32
    %42 = vector.broadcast %cst_21 : f32 to vector<8x128xf32>
    %43 = arith.subf %42, %34 : vector<8x128xf32>
    %44 = arith.mulf %43, %41 : vector<8x128xf32>
    %45 = arith.mulf %34, %13 : vector<8x128xf32>
    %46 = arith.addf %44, %45 : vector<8x128xf32>
    %c1_i32 = arith.constant 1 : i32
    %c8_i32_22 = arith.constant 8 : i32
    %47 = arith.muli %c1_i32, %c8_i32_22 : i32
    %48 = tpu.assume_multiple %47, 8 : i32
    %49 = arith.index_cast %48 : i32 to index
    %c0_23 = arith.constant 0 : index
    %50 = vector.load %arg11[%49, %c0_23] : memref<64x384xf32, #tpu.memory_space<vmem>>, vector<8x384xf32>
    %cst_24 = arith.constant dense<0.000000e+00> : vector<8x384xf32>
    %51 = tpu.matmul %46, %11, %cst_24 {dimension_numbers = #tpu.dot_dimension_numbers<[1], [0], [0], [1], [0, 0, 1, 1], [], []>} : vector<8x128xf32>, vector<128x384xf32>, vector<8x384xf32> -> vector<8x384xf32>
    %52 = vector.extract_strided_slice %50 {offsets = [0, 0], sizes = [8, 128], strides = [1, 1]} : vector<8x384xf32> to vector<8x128xf32>
    %53 = vector.extract_strided_slice %51 {offsets = [0, 0], sizes = [8, 128], strides = [1, 1]} : vector<8x384xf32> to vector<8x128xf32>
    %54 = arith.addf %52, %53 : vector<8x128xf32>
    %55 = arith.negf %54 : vector<8x128xf32>
    %56 = math.exp %55 : vector<8x128xf32>
    %cst_25 = arith.constant 1.000000e+00 : f32
    %57 = vector.broadcast %cst_25 : f32 to vector<8x128xf32>
    %58 = arith.addf %57, %56 : vector<8x128xf32>
    %59 = arith.divf %57, %58 : vector<8x128xf32>
    %60 = vector.extract_strided_slice %50 {offsets = [0, 128], sizes = [8, 128], strides = [1, 1]} : vector<8x384xf32> to vector<8x128xf32>
    %61 = vector.extract_strided_slice %51 {offsets = [0, 128], sizes = [8, 128], strides = [1, 1]} : vector<8x384xf32> to vector<8x128xf32>
    %62 = arith.addf %60, %61 : vector<8x128xf32>
    %63 = arith.negf %62 : vector<8x128xf32>
    %64 = math.exp %63 : vector<8x128xf32>
    %cst_26 = arith.constant 1.000000e+00 : f32
    %65 = vector.broadcast %cst_26 : f32 to vector<8x128xf32>
    %66 = arith.addf %65, %64 : vector<8x128xf32>
    %67 = arith.divf %65, %66 : vector<8x128xf32>
    %68 = vector.extract_strided_slice %50 {offsets = [0, 256], sizes = [8, 128], strides = [1, 1]} : vector<8x384xf32> to vector<8x128xf32>
    %69 = vector.extract_strided_slice %51 {offsets = [0, 256], sizes = [8, 128], strides = [1, 1]} : vector<8x384xf32> to vector<8x128xf32>
    %70 = vector.broadcast %12 : vector<1x128xf32> to vector<8x128xf32>
    %71 = arith.addf %69, %70 : vector<8x128xf32>
    %72 = arith.mulf %59, %71 : vector<8x128xf32>
    %73 = arith.addf %68, %72 : vector<8x128xf32>
    %74 = math.tanh %73 : vector<8x128xf32>
    %cst_27 = arith.constant 1.000000e+00 : f32
    %75 = vector.broadcast %cst_27 : f32 to vector<8x128xf32>
    %76 = arith.subf %75, %67 : vector<8x128xf32>
    %77 = arith.mulf %76, %74 : vector<8x128xf32>
    %78 = arith.mulf %67, %46 : vector<8x128xf32>
    %79 = arith.addf %77, %78 : vector<8x128xf32>
    %c2_i32 = arith.constant 2 : i32
    %c8_i32_28 = arith.constant 8 : i32
    %80 = arith.muli %c2_i32, %c8_i32_28 : i32
    %81 = tpu.assume_multiple %80, 8 : i32
    %82 = arith.index_cast %81 : i32 to index
    %c0_29 = arith.constant 0 : index
    %83 = vector.load %arg11[%82, %c0_29] : memref<64x384xf32, #tpu.memory_space<vmem>>, vector<8x384xf32>
    %cst_30 = arith.constant dense<0.000000e+00> : vector<8x384xf32>
    %84 = tpu.matmul %79, %11, %cst_30 {dimension_numbers = #tpu.dot_dimension_numbers<[1], [0], [0], [1], [0, 0, 1, 1], [], []>} : vector<8x128xf32>, vector<128x384xf32>, vector<8x384xf32> -> vector<8x384xf32>
    %85 = vector.extract_strided_slice %83 {offsets = [0, 0], sizes = [8, 128], strides = [1, 1]} : vector<8x384xf32> to vector<8x128xf32>
    %86 = vector.extract_strided_slice %84 {offsets = [0, 0], sizes = [8, 128], strides = [1, 1]} : vector<8x384xf32> to vector<8x128xf32>
    %87 = arith.addf %85, %86 : vector<8x128xf32>
    %88 = arith.negf %87 : vector<8x128xf32>
    %89 = math.exp %88 : vector<8x128xf32>
    %cst_31 = arith.constant 1.000000e+00 : f32
    %90 = vector.broadcast %cst_31 : f32 to vector<8x128xf32>
    %91 = arith.addf %90, %89 : vector<8x128xf32>
    %92 = arith.divf %90, %91 : vector<8x128xf32>
    %93 = vector.extract_strided_slice %83 {offsets = [0, 128], sizes = [8, 128], strides = [1, 1]} : vector<8x384xf32> to vector<8x128xf32>
    %94 = vector.extract_strided_slice %84 {offsets = [0, 128], sizes = [8, 128], strides = [1, 1]} : vector<8x384xf32> to vector<8x128xf32>
    %95 = arith.addf %93, %94 : vector<8x128xf32>
    %96 = arith.negf %95 : vector<8x128xf32>
    %97 = math.exp %96 : vector<8x128xf32>
    %cst_32 = arith.constant 1.000000e+00 : f32
    %98 = vector.broadcast %cst_32 : f32 to vector<8x128xf32>
    %99 = arith.addf %98, %97 : vector<8x128xf32>
    %100 = arith.divf %98, %99 : vector<8x128xf32>
    %101 = vector.extract_strided_slice %83 {offsets = [0, 256], sizes = [8, 128], strides = [1, 1]} : vector<8x384xf32> to vector<8x128xf32>
    %102 = vector.extract_strided_slice %84 {offsets = [0, 256], sizes = [8, 128], strides = [1, 1]} : vector<8x384xf32> to vector<8x128xf32>
    %103 = vector.broadcast %12 : vector<1x128xf32> to vector<8x128xf32>
    %104 = arith.addf %102, %103 : vector<8x128xf32>
    %105 = arith.mulf %92, %104 : vector<8x128xf32>
    %106 = arith.addf %101, %105 : vector<8x128xf32>
    %107 = math.tanh %106 : vector<8x128xf32>
    %cst_33 = arith.constant 1.000000e+00 : f32
    %108 = vector.broadcast %cst_33 : f32 to vector<8x128xf32>
    %109 = arith.subf %108, %100 : vector<8x128xf32>
    %110 = arith.mulf %109, %107 : vector<8x128xf32>
    %111 = arith.mulf %100, %79 : vector<8x128xf32>
    %112 = arith.addf %110, %111 : vector<8x128xf32>
    %c3_i32 = arith.constant 3 : i32
    %c8_i32_34 = arith.constant 8 : i32
    %113 = arith.muli %c3_i32, %c8_i32_34 : i32
    %114 = tpu.assume_multiple %113, 8 : i32
    %115 = arith.index_cast %114 : i32 to index
    %c0_35 = arith.constant 0 : index
    %116 = vector.load %arg11[%115, %c0_35] : memref<64x384xf32, #tpu.memory_space<vmem>>, vector<8x384xf32>
    %cst_36 = arith.constant dense<0.000000e+00> : vector<8x384xf32>
    %117 = tpu.matmul %112, %11, %cst_36 {dimension_numbers = #tpu.dot_dimension_numbers<[1], [0], [0], [1], [0, 0, 1, 1], [], []>} : vector<8x128xf32>, vector<128x384xf32>, vector<8x384xf32> -> vector<8x384xf32>
    %118 = vector.extract_strided_slice %116 {offsets = [0, 0], sizes = [8, 128], strides = [1, 1]} : vector<8x384xf32> to vector<8x128xf32>
    %119 = vector.extract_strided_slice %117 {offsets = [0, 0], sizes = [8, 128], strides = [1, 1]} : vector<8x384xf32> to vector<8x128xf32>
    %120 = arith.addf %118, %119 : vector<8x128xf32>
    %121 = arith.negf %120 : vector<8x128xf32>
    %122 = math.exp %121 : vector<8x128xf32>
    %cst_37 = arith.constant 1.000000e+00 : f32
    %123 = vector.broadcast %cst_37 : f32 to vector<8x128xf32>
    %124 = arith.addf %123, %122 : vector<8x128xf32>
    %125 = arith.divf %123, %124 : vector<8x128xf32>
    %126 = vector.extract_strided_slice %116 {offsets = [0, 128], sizes = [8, 128], strides = [1, 1]} : vector<8x384xf32> to vector<8x128xf32>
    %127 = vector.extract_strided_slice %117 {offsets = [0, 128], sizes = [8, 128], strides = [1, 1]} : vector<8x384xf32> to vector<8x128xf32>
    %128 = arith.addf %126, %127 : vector<8x128xf32>
    %129 = arith.negf %128 : vector<8x128xf32>
    %130 = math.exp %129 : vector<8x128xf32>
    %cst_38 = arith.constant 1.000000e+00 : f32
    %131 = vector.broadcast %cst_38 : f32 to vector<8x128xf32>
    %132 = arith.addf %131, %130 : vector<8x128xf32>
    %133 = arith.divf %131, %132 : vector<8x128xf32>
    %134 = vector.extract_strided_slice %116 {offsets = [0, 256], sizes = [8, 128], strides = [1, 1]} : vector<8x384xf32> to vector<8x128xf32>
    %135 = vector.extract_strided_slice %117 {offsets = [0, 256], sizes = [8, 128], strides = [1, 1]} : vector<8x384xf32> to vector<8x128xf32>
    %136 = vector.broadcast %12 : vector<1x128xf32> to vector<8x128xf32>
    %137 = arith.addf %135, %136 : vector<8x128xf32>
    %138 = arith.mulf %125, %137 : vector<8x128xf32>
    %139 = arith.addf %134, %138 : vector<8x128xf32>
    %140 = math.tanh %139 : vector<8x128xf32>
    %cst_39 = arith.constant 1.000000e+00 : f32
    %141 = vector.broadcast %cst_39 : f32 to vector<8x128xf32>
    %142 = arith.subf %141, %133 : vector<8x128xf32>
    %143 = arith.mulf %142, %140 : vector<8x128xf32>
    %144 = arith.mulf %133, %112 : vector<8x128xf32>
    %145 = arith.addf %143, %144 : vector<8x128xf32>
    %c4_i32 = arith.constant 4 : i32
    %c8_i32_40 = arith.constant 8 : i32
    %146 = arith.muli %c4_i32, %c8_i32_40 : i32
    %147 = tpu.assume_multiple %146, 8 : i32
    %148 = arith.index_cast %147 : i32 to index
    %c0_41 = arith.constant 0 : index
    %149 = vector.load %arg11[%148, %c0_41] : memref<64x384xf32, #tpu.memory_space<vmem>>, vector<8x384xf32>
    %cst_42 = arith.constant dense<0.000000e+00> : vector<8x384xf32>
    %150 = tpu.matmul %145, %11, %cst_42 {dimension_numbers = #tpu.dot_dimension_numbers<[1], [0], [0], [1], [0, 0, 1, 1], [], []>} : vector<8x128xf32>, vector<128x384xf32>, vector<8x384xf32> -> vector<8x384xf32>
    %151 = vector.extract_strided_slice %149 {offsets = [0, 0], sizes = [8, 128], strides = [1, 1]} : vector<8x384xf32> to vector<8x128xf32>
    %152 = vector.extract_strided_slice %150 {offsets = [0, 0], sizes = [8, 128], strides = [1, 1]} : vector<8x384xf32> to vector<8x128xf32>
    %153 = arith.addf %151, %152 : vector<8x128xf32>
    %154 = arith.negf %153 : vector<8x128xf32>
    %155 = math.exp %154 : vector<8x128xf32>
    %cst_43 = arith.constant 1.000000e+00 : f32
    %156 = vector.broadcast %cst_43 : f32 to vector<8x128xf32>
    %157 = arith.addf %156, %155 : vector<8x128xf32>
    %158 = arith.divf %156, %157 : vector<8x128xf32>
    %159 = vector.extract_strided_slice %149 {offsets = [0, 128], sizes = [8, 128], strides = [1, 1]} : vector<8x384xf32> to vector<8x128xf32>
    %160 = vector.extract_strided_slice %150 {offsets = [0, 128], sizes = [8, 128], strides = [1, 1]} : vector<8x384xf32> to vector<8x128xf32>
    %161 = arith.addf %159, %160 : vector<8x128xf32>
    %162 = arith.negf %161 : vector<8x128xf32>
    %163 = math.exp %162 : vector<8x128xf32>
    %cst_44 = arith.constant 1.000000e+00 : f32
    %164 = vector.broadcast %cst_44 : f32 to vector<8x128xf32>
    %165 = arith.addf %164, %163 : vector<8x128xf32>
    %166 = arith.divf %164, %165 : vector<8x128xf32>
    %167 = vector.extract_strided_slice %149 {offsets = [0, 256], sizes = [8, 128], strides = [1, 1]} : vector<8x384xf32> to vector<8x128xf32>
    %168 = vector.extract_strided_slice %150 {offsets = [0, 256], sizes = [8, 128], strides = [1, 1]} : vector<8x384xf32> to vector<8x128xf32>
    %169 = vector.broadcast %12 : vector<1x128xf32> to vector<8x128xf32>
    %170 = arith.addf %168, %169 : vector<8x128xf32>
    %171 = arith.mulf %158, %170 : vector<8x128xf32>
    %172 = arith.addf %167, %171 : vector<8x128xf32>
    %173 = math.tanh %172 : vector<8x128xf32>
    %cst_45 = arith.constant 1.000000e+00 : f32
    %174 = vector.broadcast %cst_45 : f32 to vector<8x128xf32>
    %175 = arith.subf %174, %166 : vector<8x128xf32>
    %176 = arith.mulf %175, %173 : vector<8x128xf32>
    %177 = arith.mulf %166, %145 : vector<8x128xf32>
    %178 = arith.addf %176, %177 : vector<8x128xf32>
    %c5_i32 = arith.constant 5 : i32
    %c8_i32_46 = arith.constant 8 : i32
    %179 = arith.muli %c5_i32, %c8_i32_46 : i32
    %180 = tpu.assume_multiple %179, 8 : i32
    %181 = arith.index_cast %180 : i32 to index
    %c0_47 = arith.constant 0 : index
    %182 = vector.load %arg11[%181, %c0_47] : memref<64x384xf32, #tpu.memory_space<vmem>>, vector<8x384xf32>
    %cst_48 = arith.constant dense<0.000000e+00> : vector<8x384xf32>
    %183 = tpu.matmul %178, %11, %cst_48 {dimension_numbers = #tpu.dot_dimension_numbers<[1], [0], [0], [1], [0, 0, 1, 1], [], []>} : vector<8x128xf32>, vector<128x384xf32>, vector<8x384xf32> -> vector<8x384xf32>
    %184 = vector.extract_strided_slice %182 {offsets = [0, 0], sizes = [8, 128], strides = [1, 1]} : vector<8x384xf32> to vector<8x128xf32>
    %185 = vector.extract_strided_slice %183 {offsets = [0, 0], sizes = [8, 128], strides = [1, 1]} : vector<8x384xf32> to vector<8x128xf32>
    %186 = arith.addf %184, %185 : vector<8x128xf32>
    %187 = arith.negf %186 : vector<8x128xf32>
    %188 = math.exp %187 : vector<8x128xf32>
    %cst_49 = arith.constant 1.000000e+00 : f32
    %189 = vector.broadcast %cst_49 : f32 to vector<8x128xf32>
    %190 = arith.addf %189, %188 : vector<8x128xf32>
    %191 = arith.divf %189, %190 : vector<8x128xf32>
    %192 = vector.extract_strided_slice %182 {offsets = [0, 128], sizes = [8, 128], strides = [1, 1]} : vector<8x384xf32> to vector<8x128xf32>
    %193 = vector.extract_strided_slice %183 {offsets = [0, 128], sizes = [8, 128], strides = [1, 1]} : vector<8x384xf32> to vector<8x128xf32>
    %194 = arith.addf %192, %193 : vector<8x128xf32>
    %195 = arith.negf %194 : vector<8x128xf32>
    %196 = math.exp %195 : vector<8x128xf32>
    %cst_50 = arith.constant 1.000000e+00 : f32
    %197 = vector.broadcast %cst_50 : f32 to vector<8x128xf32>
    %198 = arith.addf %197, %196 : vector<8x128xf32>
    %199 = arith.divf %197, %198 : vector<8x128xf32>
    %200 = vector.extract_strided_slice %182 {offsets = [0, 256], sizes = [8, 128], strides = [1, 1]} : vector<8x384xf32> to vector<8x128xf32>
    %201 = vector.extract_strided_slice %183 {offsets = [0, 256], sizes = [8, 128], strides = [1, 1]} : vector<8x384xf32> to vector<8x128xf32>
    %202 = vector.broadcast %12 : vector<1x128xf32> to vector<8x128xf32>
    %203 = arith.addf %201, %202 : vector<8x128xf32>
    %204 = arith.mulf %191, %203 : vector<8x128xf32>
    %205 = arith.addf %200, %204 : vector<8x128xf32>
    %206 = math.tanh %205 : vector<8x128xf32>
    %cst_51 = arith.constant 1.000000e+00 : f32
    %207 = vector.broadcast %cst_51 : f32 to vector<8x128xf32>
    %208 = arith.subf %207, %199 : vector<8x128xf32>
    %209 = arith.mulf %208, %206 : vector<8x128xf32>
    %210 = arith.mulf %199, %178 : vector<8x128xf32>
    %211 = arith.addf %209, %210 : vector<8x128xf32>
    %c6_i32 = arith.constant 6 : i32
    %c8_i32_52 = arith.constant 8 : i32
    %212 = arith.muli %c6_i32, %c8_i32_52 : i32
    %213 = tpu.assume_multiple %212, 8 : i32
    %214 = arith.index_cast %213 : i32 to index
    %c0_53 = arith.constant 0 : index
    %215 = vector.load %arg11[%214, %c0_53] : memref<64x384xf32, #tpu.memory_space<vmem>>, vector<8x384xf32>
    %cst_54 = arith.constant dense<0.000000e+00> : vector<8x384xf32>
    %216 = tpu.matmul %211, %11, %cst_54 {dimension_numbers = #tpu.dot_dimension_numbers<[1], [0], [0], [1], [0, 0, 1, 1], [], []>} : vector<8x128xf32>, vector<128x384xf32>, vector<8x384xf32> -> vector<8x384xf32>
    %217 = vector.extract_strided_slice %215 {offsets = [0, 0], sizes = [8, 128], strides = [1, 1]} : vector<8x384xf32> to vector<8x128xf32>
    %218 = vector.extract_strided_slice %216 {offsets = [0, 0], sizes = [8, 128], strides = [1, 1]} : vector<8x384xf32> to vector<8x128xf32>
    %219 = arith.addf %217, %218 : vector<8x128xf32>
    %220 = arith.negf %219 : vector<8x128xf32>
    %221 = math.exp %220 : vector<8x128xf32>
    %cst_55 = arith.constant 1.000000e+00 : f32
    %222 = vector.broadcast %cst_55 : f32 to vector<8x128xf32>
    %223 = arith.addf %222, %221 : vector<8x128xf32>
    %224 = arith.divf %222, %223 : vector<8x128xf32>
    %225 = vector.extract_strided_slice %215 {offsets = [0, 128], sizes = [8, 128], strides = [1, 1]} : vector<8x384xf32> to vector<8x128xf32>
    %226 = vector.extract_strided_slice %216 {offsets = [0, 128], sizes = [8, 128], strides = [1, 1]} : vector<8x384xf32> to vector<8x128xf32>
    %227 = arith.addf %225, %226 : vector<8x128xf32>
    %228 = arith.negf %227 : vector<8x128xf32>
    %229 = math.exp %228 : vector<8x128xf32>
    %cst_56 = arith.constant 1.000000e+00 : f32
    %230 = vector.broadcast %cst_56 : f32 to vector<8x128xf32>
    %231 = arith.addf %230, %229 : vector<8x128xf32>
    %232 = arith.divf %230, %231 : vector<8x128xf32>
    %233 = vector.extract_strided_slice %215 {offsets = [0, 256], sizes = [8, 128], strides = [1, 1]} : vector<8x384xf32> to vector<8x128xf32>
    %234 = vector.extract_strided_slice %216 {offsets = [0, 256], sizes = [8, 128], strides = [1, 1]} : vector<8x384xf32> to vector<8x128xf32>
    %235 = vector.broadcast %12 : vector<1x128xf32> to vector<8x128xf32>
    %236 = arith.addf %234, %235 : vector<8x128xf32>
    %237 = arith.mulf %224, %236 : vector<8x128xf32>
    %238 = arith.addf %233, %237 : vector<8x128xf32>
    %239 = math.tanh %238 : vector<8x128xf32>
    %cst_57 = arith.constant 1.000000e+00 : f32
    %240 = vector.broadcast %cst_57 : f32 to vector<8x128xf32>
    %241 = arith.subf %240, %232 : vector<8x128xf32>
    %242 = arith.mulf %241, %239 : vector<8x128xf32>
    %243 = arith.mulf %232, %211 : vector<8x128xf32>
    %244 = arith.addf %242, %243 : vector<8x128xf32>
    %c7_i32 = arith.constant 7 : i32
    %c8_i32_58 = arith.constant 8 : i32
    %245 = arith.muli %c7_i32, %c8_i32_58 : i32
    %246 = tpu.assume_multiple %245, 8 : i32
    %247 = arith.index_cast %246 : i32 to index
    %c0_59 = arith.constant 0 : index
    %248 = vector.load %arg11[%247, %c0_59] : memref<64x384xf32, #tpu.memory_space<vmem>>, vector<8x384xf32>
    %cst_60 = arith.constant dense<0.000000e+00> : vector<8x384xf32>
    %249 = tpu.matmul %244, %11, %cst_60 {dimension_numbers = #tpu.dot_dimension_numbers<[1], [0], [0], [1], [0, 0, 1, 1], [], []>} : vector<8x128xf32>, vector<128x384xf32>, vector<8x384xf32> -> vector<8x384xf32>
    %250 = vector.extract_strided_slice %248 {offsets = [0, 0], sizes = [8, 128], strides = [1, 1]} : vector<8x384xf32> to vector<8x128xf32>
    %251 = vector.extract_strided_slice %249 {offsets = [0, 0], sizes = [8, 128], strides = [1, 1]} : vector<8x384xf32> to vector<8x128xf32>
    %252 = arith.addf %250, %251 : vector<8x128xf32>
    %253 = arith.negf %252 : vector<8x128xf32>
    %254 = math.exp %253 : vector<8x128xf32>
    %cst_61 = arith.constant 1.000000e+00 : f32
    %255 = vector.broadcast %cst_61 : f32 to vector<8x128xf32>
    %256 = arith.addf %255, %254 : vector<8x128xf32>
    %257 = arith.divf %255, %256 : vector<8x128xf32>
    %258 = vector.extract_strided_slice %248 {offsets = [0, 128], sizes = [8, 128], strides = [1, 1]} : vector<8x384xf32> to vector<8x128xf32>
    %259 = vector.extract_strided_slice %249 {offsets = [0, 128], sizes = [8, 128], strides = [1, 1]} : vector<8x384xf32> to vector<8x128xf32>
    %260 = arith.addf %258, %259 : vector<8x128xf32>
    %261 = arith.negf %260 : vector<8x128xf32>
    %262 = math.exp %261 : vector<8x128xf32>
    %cst_62 = arith.constant 1.000000e+00 : f32
    %263 = vector.broadcast %cst_62 : f32 to vector<8x128xf32>
    %264 = arith.addf %263, %262 : vector<8x128xf32>
    %265 = arith.divf %263, %264 : vector<8x128xf32>
    %266 = vector.extract_strided_slice %248 {offsets = [0, 256], sizes = [8, 128], strides = [1, 1]} : vector<8x384xf32> to vector<8x128xf32>
    %267 = vector.extract_strided_slice %249 {offsets = [0, 256], sizes = [8, 128], strides = [1, 1]} : vector<8x384xf32> to vector<8x128xf32>
    %268 = vector.broadcast %12 : vector<1x128xf32> to vector<8x128xf32>
    %269 = arith.addf %267, %268 : vector<8x128xf32>
    %270 = arith.mulf %257, %269 : vector<8x128xf32>
    %271 = arith.addf %266, %270 : vector<8x128xf32>
    %272 = math.tanh %271 : vector<8x128xf32>
    %cst_63 = arith.constant 1.000000e+00 : f32
    %273 = vector.broadcast %cst_63 : f32 to vector<8x128xf32>
    %274 = arith.subf %273, %265 : vector<8x128xf32>
    %275 = arith.mulf %274, %272 : vector<8x128xf32>
    %276 = arith.mulf %265, %244 : vector<8x128xf32>
    %277 = arith.addf %275, %276 : vector<8x128xf32>
    %c8_i32_64 = arith.constant 8 : i32
    %c0_65 = arith.constant 0 : index
    %c0_66 = arith.constant 0 : index
    %278 = vector.load %arg10[%c0_65, %c0_66] : memref<8x128xf32, #tpu.memory_space<vmem>>, vector<8x128xf32>
    tpu.vector_store %arg10[%c0_65, %c0_66], %277 {strides = array<i32>} : memref<8x128xf32, #tpu.memory_space<vmem>>, vector<8x128xf32>,
    %c0_i32_67 = arith.constant 0 : i32
    %279 = arith.cmpi eq, %arg1, %c0_i32_67 : i32
    %280 = arith.extui %279 : i1 to i32
    %c0_i32_68 = arith.constant 0 : i32
    %281 = arith.cmpi ne, %280, %c0_i32_68 : i32
    scf.if %281 {
      %c0_69 = arith.constant 0 : index
      %c0_70 = arith.constant 0 : index
      %282 = vector.load %arg10[%c0_69, %c0_70] : memref<8x128xf32, #tpu.memory_space<vmem>>, vector<8x128xf32>
      %283 = arith.truncf %282 : vector<8x128xf32> to vector<8x128xbf16>
      %c0_71 = arith.constant 0 : index
      %c0_72 = arith.constant 0 : index
      %284 = vector.load %arg7[%c0_71, %c0_72] : memref<128x128xbf16, #tpu.memory_space<vmem>>, vector<128x128xbf16>
      %cst_73 = arith.constant dense<0.000000e+00> : vector<8x128xf32>
      %285 = tpu.matmul %283, %284, %cst_73 {dimension_numbers = #tpu.dot_dimension_numbers<[1], [0], [0], [1], [0, 0, 1, 1], [], []>} : vector<8x128xbf16>, vector<128x128xbf16>, vector<8x128xf32> -> vector<8x128xf32>
      %c0_74 = arith.constant 0 : index
      %c0_75 = arith.constant 0 : index
      %286 = vector.load %arg8[%c0_74, %c0_75] : memref<1x128xf32, #tpu.memory_space<vmem>>, vector<1x128xf32>
      %287 = vector.broadcast %286 : vector<1x128xf32> to vector<8x128xf32>
      %288 = arith.addf %285, %287 : vector<8x128xf32>
      %c0_76 = arith.constant 0 : index
      %c0_77 = arith.constant 0 : index
      %289 = vector.load %arg9[%c0_76, %c0_77] : memref<8x128xf32, #tpu.memory_space<vmem>>, vector<8x128xf32>
      tpu.vector_store %arg9[%c0_76, %c0_77], %288 {strides = array<i32>} : memref<8x128xf32, #tpu.memory_space<vmem>>, vector<8x128xf32>,
    } else {
    }
    return
  }
  func.func @transform_0(%arg0: i32, %arg1: i32) -> (i32, i32, i32, i32) {
    %c0_i32 = arith.constant 0 : i32
    %c0_i32_0 = arith.constant 0 : i32
    %c0_i32_1 = arith.constant 0 : i32
    return %arg0, %arg1, %c0_i32, %c0_i32_0 : i32, i32, i32, i32
  }
  func.func @transform_1(%arg0: i32, %arg1: i32) -> (i32, i32) {
    %c0_i32 = arith.constant 0 : i32
    %c0_i32_0 = arith.constant 0 : i32
    %c0_i32_1 = arith.constant 0 : i32
    return %c0_i32, %c0_i32_0 : i32, i32
  }
  func.func @transform_2(%arg0: i32, %arg1: i32) -> (i32, i32) {
    %c0_i32 = arith.constant 0 : i32
    %c0_i32_0 = arith.constant 0 : i32
    %c0_i32_1 = arith.constant 0 : i32
    return %c0_i32, %c0_i32_0 : i32, i32
  }
  func.func @transform_3(%arg0: i32, %arg1: i32) -> (i32, i32) {
    %c0_i32 = arith.constant 0 : i32
    %c0_i32_0 = arith.constant 0 : i32
    %c0_i32_1 = arith.constant 0 : i32
    return %c0_i32, %c0_i32_0 : i32, i32
  }
  func.func @transform_4(%arg0: i32, %arg1: i32) -> (i32, i32) {
    %c0_i32 = arith.constant 0 : i32
    %c0_i32_0 = arith.constant 0 : i32
    %c0_i32_1 = arith.constant 0 : i32
    return %c0_i32, %c0_i32_0 : i32, i32
  }
  func.func @transform_5(%arg0: i32, %arg1: i32) -> (i32, i32) {
    %c0_i32 = arith.constant 0 : i32
    %c0_i32_0 = arith.constant 0 : i32
    %c0_i32_1 = arith.constant 0 : i32
    return %c0_i32, %c0_i32_0 : i32, i32
  }
  func.func @transform_6(%arg0: i32, %arg1: i32) -> (i32, i32) {
    %c0_i32 = arith.constant 0 : i32
    %c0_i32_0 = arith.constant 0 : i32
    %c0_i32_1 = arith.constant 0 : i32
    return %c0_i32, %c0_i32_0 : i32, i32
  }
  func.func @transform_7(%arg0: i32, %arg1: i32) -> (i32, i32) {
    %c0_i32 = arith.constant 0 : i32
    %c0_i32_0 = arith.constant 0 : i32
    return %arg0, %c0_i32 : i32, i32
  }
}

</mosaic_0001>

<llo_original>
// kernel: gencoder_forward.1
$region0: #{gencoder_forward.1}
  #allocation0 [shape = 'u32[]', space=smem, size = 0x4, offset = 0x4, fixed_abs, tag = 'smem constant byte address 0x4 - core index']
  #allocation1 [shape = 'u32[144,128]{1,0:T(1,128)}', space=vmem, size = 0x12000, scoped, tag = 'internal scratch']
  #allocation2 [shape = 'f32[8,128]{1,0:T(8,128)}', space=vmem, size = 0x1000, scoped, tag = 'scratch operand']
  #allocation3 [shape = 'f32[64,384]{1,0:T(8,128)}', space=vmem, size = 0x18000, scoped, tag = 'scratch operand']
  %s0 = inlined_call_operand.vmem [shape: bf16[1,1,64,16], index: 0, kind: input, shape index: {}]
  %s1 = inlined_call_operand.vmem [shape: bf16[16,384], index: 1, kind: input, shape index: {}]
  %s2 = inlined_call_operand.vmem [shape: f32[128,384], index: 2, kind: input, shape index: {}]
  %s3 = inlined_call_operand.vmem [shape: f32[1,384], index: 3, kind: input, shape index: {}]
  %s4 = inlined_call_operand.vmem [shape: f32[1,128], index: 4, kind: input, shape index: {}]
  %s5 = inlined_call_operand.vmem [shape: bf16[128,128], index: 5, kind: input, shape index: {}]
  %s6 = inlined_call_operand.vmem [shape: f32[1,128], index: 6, kind: input, shape index: {}]
  %s7 = inlined_call_operand.vmem [shape: f32[8,128], index: 7, kind: output, shape index: {}]
  %s8 = sld [smem:[#allocation0]]
  $region46: #{gencoder_forward.1} parent=0
    _
  %s10 = ssub.s32 1, %s8
  %s11 = scalar_select 0, %s10, %s8
  // Predicated region
  $region2: #{gencoder_forward.1} parent=0 // pred_check
    _
  $region3: #{gencoder_forward.1} parent=0 // pred_check_branch
    %13 = sbr.rel (0) target = $region5
  $region4: #{gencoder_forward.1} parent=0 // pred_region
    _
  $region5: #{gencoder_forward.1} parent=0 // pred_fallthru
    _
  // Predicated region
  $region6: #{gencoder_forward.1} parent=0 // pred_check
    _
  $region7: #{gencoder_forward.1} parent=0 // pred_check_branch
    %15 = sbr.rel (0) target = $region9
  $region8: #{gencoder_forward.1} parent=0 // pred_region
    _
  $region9: #{gencoder_forward.1} parent=0 // pred_fallthru
    _
  // Predicated region
  $region10: #{gencoder_forward.1} parent=0 // pred_check
    _
  $region11: #{gencoder_forward.1} parent=0 // pred_check_branch
    %17 = sbr.rel (0) target = $region13
  $region12: #{gencoder_forward.1} parent=0 // pred_region
    _
  $region13: #{gencoder_forward.1} parent=0 // pred_fallthru
    _
  // Predicated region
  $region14: #{gencoder_forward.1} parent=0 // pred_check
    _
  $region15: #{gencoder_forward.1} parent=0 // pred_check_branch
    %19 = sbr.rel (0) target = $region17
  $region16: #{gencoder_forward.1} parent=0 // pred_region
    _
  $region17: #{gencoder_forward.1} parent=0 // pred_fallthru
    _
  // Predicated region
  $region18: #{gencoder_forward.1} parent=0 // pred_check
    _
  $region19: #{gencoder_forward.1} parent=0 // pred_check_branch
    %21 = sbr.rel (0) target = $region21
  $region20: #{gencoder_forward.1} parent=0 // pred_region
    _
  $region21: #{gencoder_forward.1} parent=0 // pred_fallthru
    _
  // Predicated region
  $region22: #{gencoder_forward.1} parent=0 // pred_check
    _
  $region23: #{gencoder_forward.1} parent=0 // pred_check_branch
    %23 = sbr.rel (0) target = $region25
  $region24: #{gencoder_forward.1} parent=0 // pred_region
    _
  $region25: #{gencoder_forward.1} parent=0 // pred_fallthru
    _
  // Predicated region
  $region26: #{gencoder_forward.1} parent=0 // pred_check
    _
  $region27: #{gencoder_forward.1} parent=0 // pred_check_branch
    %25 = sbr.rel (0) target = $region29
  $region28: #{gencoder_forward.1} parent=0 // pred_region
    _
  $region29: #{gencoder_forward.1} parent=0 // pred_fallthru
    _
  %p27 = scmp.eq.s32.totalorder 0, 0
  // Predicated region
  $region30: #{gencoder_forward.1} parent=0 // pred_check
    %p28 = pneg %p27
  $region31: #{gencoder_forward.1} parent=0 // pred_check_branch
    %30 = sbr.rel (%p28) target = $region33
  $region32: #{gencoder_forward.1} parent=0 // pred_region
    %31 = vst [vmem:[#allocation2] sm:$0xff] 0.0
  $region33: #{gencoder_forward.1} parent=0 // pred_fallthru
    _
  %v32 = vld [vmem:[%s0] sm:$0xf]
  %v33 = vld [vmem:[%s0 + $0x4] sm:$0xf]
  %v34 = vld [vmem:[%s0 + $0x8] sm:$0xf]
  %v35 = vld [vmem:[%s0 + $0xc] sm:$0xf]
  %v36 = vld [vmem:[%s0 + $0x10] sm:$0xf]
  %v37 = vld [vmem:[%s0 + $0x14] sm:$0xf]
  %v38 = vld [vmem:[%s0 + $0x18] sm:$0xf]
  %v39 = vld [vmem:[%s0 + $0x1c] sm:$0xf]
  %v40 = vld [vmem:[%s1] sm:$0xff]
  %v41 = vld [vmem:[%s1 + $0x8] sm:$0xf]
  %v42 = vld [vmem:[%s1 + $0xc] sm:$0xff]
  %v43 = vld [vmem:[%s1 + $0x14] sm:$0xf]
  %v44 = vld [vmem:[%s3] sm:$0x7]
  %v46 = vlaneseq
  %v47 = vshrl.u32 %v46, 7
  %v48 = vsub.s32 0, %v47
  %v49 = vrot.slane %v44, %v48
  %v50 = vlaneseq
  %v51 = vshrl.u32 %v50, 7
  %v52 = vsub.s32 1, %v51
  %v53 = vrot.slane %v44, %v52
  %v54 = vlaneseq
  %v55 = vshrl.u32 %v54, 7
  %v56 = vsub.s32 2, %v55
  %v57 = vrot.slane %v44, %v56
  %v69 = vunpack.c.l.b16 %v32
  %v70 = vunpack.c.l.b16 %v33
  %v71 = vunpack.c.l.b16 %v34
  %v72 = vunpack.c.l.b16 %v35
  %v73 = vunpack.c.l.b16 %v36
  %v74 = vunpack.c.l.b16 %v37
  %v75 = vunpack.c.l.b16 %v38
  %v76 = vunpack.c.l.b16 %v39
  %v77 = vpack.c.b16 %v70, %v69
  %v78 = vpack.c.b16 %v72, %v71
  %v79 = vpack.c.b16 %v74, %v73
  %v80 = vpack.c.b16 %v76, %v75
  %v85 = vunpack.c.l.b16 %v40
  %v86 = vunpack.c.h.b16 %v40
  %v87 = vunpack.c.l.b16 %v41
  %v88 = vunpack.c.l.b16 %v42
  %v89 = vunpack.c.h.b16 %v42
  %v90 = vunpack.c.l.b16 %v43
  %v91 = vpack.c.b16 %v88, %v85
  %v92 = vpack.c.b16 %v89, %v86
  %v93 = vpack.c.b16 %v90, %v87
  %vm97 = vcmask 130048
  %v99 = vsel %vm97, %v77, 0
  %v102 = vsel %vm97, %v78, 0
  %v105 = vsel %vm97, %v79, 0
  %v108 = vsel %vm97, %v80, 0
  %110 = vmatprep.subr.bf16.mxu0 %v92
  %111 = vmatpush1.bf16.msra.mxu0 %v91
  %112 = vmatprep.subr.bf16.mxu0 0
  %113 = vmatpush1.bf16.msra.mxu0 0
  %114 = vmatprep.subr.bf16.mxu0 0
  %115 = vmatpush1.bf16.msra.mxu0 0
  %116 = vmatprep.subr.bf16.mxu0 0
  %117 = vmatpush1.bf16.msra.mxu0 0
  %118 = vmatprep.subr.bf16.mxu0 0
  %119 = vmatpush1.bf16.msra.mxu0 0
  %120 = vmatprep.subr.bf16.mxu0 0
  %121 = vmatpush1.bf16.msra.mxu0 0
  %122 = vmatprep.subr.bf16.mxu0 0
  %123 = vmatpush1.bf16.msra.mxu0 0
  %124 = vmatprep.subr.bf16.mxu0 0
  %125 = vmatpush1.bf16.msra.mxu0 0
  %126 = vmatprep.subr.bf16.mxu0 0
  %127 = vmatpush1.bf16.msra.mxu0 0
  %128 = vmatprep.subr.bf16.mxu0 0
  %129 = vmatpush1.bf16.msra.mxu0 0
  %130 = vmatprep.subr.bf16.mxu0 0
  %131 = vmatpush1.bf16.msra.mxu0 0
  %132 = vmatprep.subr.bf16.mxu0 0
  %133 = vmatpush1.bf16.msra.mxu0 0
  %134 = vmatprep.subr.bf16.mxu0 0
  %135 = vmatpush1.bf16.msra.mxu0 0
  %136 = vmatprep.subr.bf16.mxu0 0
  %137 = vmatpush1.bf16.msra.mxu0 0
  %138 = vmatprep.subr.bf16.mxu0 0
  %139 = vmatpush1.bf16.msra.mxu0 0
  %140 = vmatprep.subr.bf16.mxu0 0
  %141 = vmatpush1.bf16.msra.mxu0 0
  %142 = vmatprep.mubr.bf16.mxu0 0
  %143 = vmatmul.mubr.bf16.gmra.mrb[0].mxu0 %v99
  %v144 = vpop.f32.mrb[0].mxu0
  %v145 = vadd.f32 %v49, %v144
  %v146 = vpop.f32.mrb[0].mxu0
  %v147 = vadd.f32 %v53, %v146
  %v148 = vpop.f32.mrb[0].mxu0
  %v149 = vadd.f32 %v49, %v148
  %v150 = vpop.f32.mrb[0].mxu0
  %v151 = vadd.f32 %v53, %v150
  %152 = vmatprep.mubr.bf16.mxu0 0
  %153 = vmatmul.mubr.bf16.gmra.mrb[0].mxu0 %v102
  %v154 = vpop.f32.mrb[0].mxu0
  %v155 = vadd.f32 %v49, %v154
  %v156 = vpop.f32.mrb[0].mxu0
  %v157 = vadd.f32 %v53, %v156
  %v158 = vpop.f32.mrb[0].mxu0
  %v159 = vadd.f32 %v49, %v158
  %v160 = vpop.f32.mrb[0].mxu0
  %v161 = vadd.f32 %v53, %v160
  %162 = vmatprep.mubr.bf16.mxu0 0
  %163 = vmatmul.mubr.bf16.gmra.mrb[0].mxu0 %v105
  %v164 = vpop.f32.mrb[0].mxu0
  %v165 = vadd.f32 %v49, %v164
  %v166 = vpop.f32.mrb[0].mxu0
  %v167 = vadd.f32 %v53, %v166
  %v168 = vpop.f32.mrb[0].mxu0
  %v169 = vadd.f32 %v49, %v168
  %v170 = vpop.f32.mrb[0].mxu0
  %v171 = vadd.f32 %v53, %v170
  %172 = vmatprep.mubr.bf16.mxu0 0
  %173 = vmatmul.mubr.bf16.gmra.mrb[0].mxu0 %v108
  %v174 = vpop.f32.mrb[0].mxu0
  %v175 = vadd.f32 %v49, %v174
  %v176 = vpop.f32.mrb[0].mxu0
  %v177 = vadd.f32 %v53, %v176
  %v178 = vpop.f32.mrb[0].mxu0
  %v179 = vadd.f32 %v49, %v178
  %v180 = vpop.f32.mrb[0].mxu0
  %v181 = vadd.f32 %v53, %v180
  %182 = vdwg.mxu0
  %183 = vmatprep.subr.bf16.mxu0 0
  %184 = vmatpush1.bf16.msra.mxu0 %v93
  %185 = vmatprep.subr.bf16.mxu0 0
  %186 = vmatpush1.bf16.msra.mxu0 0
  %187 = vmatprep.subr.bf16.mxu0 0
  %188 = vmatpush1.bf16.msra.mxu0 0
  %189 = vmatprep.subr.bf16.mxu0 0
  %190 = vmatpush1.bf16.msra.mxu0 0
  %191 = vmatprep.subr.bf16.mxu0 0
  %192 = vmatpush1.bf16.msra.mxu0 0
  %193 = vmatprep.subr.bf16.mxu0 0
  %194 = vmatpush1.bf16.msra.mxu0 0
  %195 = vmatprep.subr.bf16.mxu0 0
  %196 = vmatpush1.bf16.msra.mxu0 0
  %197 = vmatprep.subr.bf16.mxu0 0
  %198 = vmatpush1.bf16.msra.mxu0 0
  %199 = vmatprep.subr.bf16.mxu0 0
  %200 = vmatpush1.bf16.msra.mxu0 0
  %201 = vmatprep.subr.bf16.mxu0 0
  %202 = vmatpush1.bf16.msra.mxu0 0
  %203 = vmatprep.subr.bf16.mxu0 0
  %204 = vmatpush1.bf16.msra.mxu0 0
  %205 = vmatprep.subr.bf16.mxu0 0
  %206 = vmatpush1.bf16.msra.mxu0 0
  %207 = vmatprep.subr.bf16.mxu0 0
  %208 = vmatpush1.bf16.msra.mxu0 0
  %209 = vmatprep.subr.bf16.mxu0 0
  %210 = vmatpush1.bf16.msra.mxu0 0
  %211 = vmatprep.subr.bf16.mxu0 0
  %212 = vmatpush1.bf16.msra.mxu0 0
  %213 = vmatprep.subr.bf16.mxu0 0
  %214 = vmatpush1.bf16.msra.mxu0 0
  %215 = vmatprep.mubr.bf16.mxu0 0
  %216 = vmatmul.mubr.bf16.gmra.mrb[0].mxu0 %v99
  %v217 = vpop.f32.mrb[0].mxu0
  %v218 = vadd.f32 %v57, %v217
  %v219 = vpop.f32.mrb[0].mxu0
  %v220 = vpop.f32.mrb[0].mxu0
  %v221 = vadd.f32 %v57, %v220
  %v222 = vpop.f32.mrb[0].mxu0
  %223 = vmatprep.mubr.bf16.mxu0 0
  %224 = vmatmul.mubr.bf16.gmra.mrb[0].mxu0 %v102
  %v225 = vpop.f32.mrb[0].mxu0
  %v226 = vadd.f32 %v57, %v225
  %v227 = vpop.f32.mrb[0].mxu0
  %v228 = vpop.f32.mrb[0].mxu0
  %v229 = vadd.f32 %v57, %v228
  %v230 = vpop.f32.mrb[0].mxu0
  %231 = vmatprep.mubr.bf16.mxu0 0
  %232 = vmatmul.mubr.bf16.gmra.mrb[0].mxu0 %v105
  %v233 = vpop.f32.mrb[0].mxu0
  %v234 = vadd.f32 %v57, %v233
  %v235 = vpop.f32.mrb[0].mxu0
  %v236 = vpop.f32.mrb[0].mxu0
  %v237 = vadd.f32 %v57, %v236
  %v238 = vpop.f32.mrb[0].mxu0
  %239 = vmatprep.mubr.bf16.mxu0 0
  %240 = vmatmul.mubr.bf16.gmra.mrb[0].mxu0 %v108
  %v241 = vpop.f32.mrb[0].mxu0
  %v242 = vadd.f32 %v57, %v241
  %v243 = vpop.f32.mrb[0].mxu0
  %v244 = vpop.f32.mrb[0].mxu0
  %v245 = vadd.f32 %v57, %v244
  %v246 = vpop.f32.mrb[0].mxu0
  %247 = vdwg.mxu0
  %248 = vst [vmem:[#allocation3] sm:$0xff] %v145
  %249 = vst [vmem:[#allocation3 + $0x8] sm:$0xff] %v147
  %250 = vst [vmem:[#allocation3 + $0x10] sm:$0xff] %v218
  %251 = vst [vmem:[#allocation3 + $0x18] sm:$0xff] %v149
  %252 = vst [vmem:[#allocation3 + $0x20] sm:$0xff] %v151
  %253 = vst [vmem:[#allocation3 + $0x28] sm:$0xff] %v221
  %254 = vst [vmem:[#allocation3 + $0x30] sm:$0xff] %v155
  %255 = vst [vmem:[#allocation3 + $0x38] sm:$0xff] %v157
  %256 = vst [vmem:[#allocation3 + $0x40] sm:$0xff] %v226
  %257 = vst [vmem:[#allocation3 + $0x48] sm:$0xff] %v159
  %258 = vst [vmem:[#allocation3 + $0x50] sm:$0xff] %v161
  %259 = vst [vmem:[#allocation3 + $0x58] sm:$0xff] %v229
  %260 = vst [vmem:[#allocation3 + $0x60] sm:$0xff] %v165
  %261 = vst [vmem:[#allocation3 + $0x68] sm:$0xff] %v167
  %262 = vst [vmem:[#allocation3 + $0x70] sm:$0xff] %v234
  %263 = vst [vmem:[#allocation3 + $0x78] sm:$0xff] %v169
  %264 = vst [vmem:[#allocation3 + $0x80] sm:$0xff] %v171
  %265 = vst [vmem:[#allocation3 + $0x88] sm:$0xff] %v237
  %266 = vst [vmem:[#allocation3 + $0x90] sm:$0xff] %v175
  %267 = vst [vmem:[#allocation3 + $0x98] sm:$0xff] %v177
  %268 = vst [vmem:[#allocation3 + $0xa0] sm:$0xff] %v242
  %269 = vst [vmem:[#allocation3 + $0xa8] sm:$0xff] %v179
  %270 = vst [vmem:[#allocation3 + $0xb0] sm:$0xff] %v181
  %271 = vst [vmem:[#allocation3 + $0xb8] sm:$0xff] %v245
  %v272 = vld [vmem:[%s2] sm:$0xff]
  %v273 = vld [vmem:[%s2 + $0x8] sm:$0xff]
  %v274 = vld [vmem:[%s2 + $0x10] sm:$0xff]
  %v275 = vld [vmem:[%s2 + $0x18] sm:$0xff]
  %v276 = vld [vmem:[%s2 + $0x20] sm:$0xff]
  %v277 = vld [vmem:[%s2 + $0x28] sm:$0xff]
  %v278 = vld [vmem:[%s2 + $0x30] sm:$0xff]
  %v279 = vld [vmem:[%s2 + $0x38] sm:$0xff]
  %v280 = vld [vmem:[%s2 + $0x40] sm:$0xff]
  %v281 = vld [vmem:[%s2 + $0x48] sm:$0xff]
  %v282 = vld [vmem:[%s2 + $0x50] sm:$0xff]
  %v283 = vld [vmem:[%s2 + $0x58] sm:$0xff]
  %v284 = vld [vmem:[%s2 + $0x60] sm:$0xff]
  %v285 = vld [vmem:[%s2 + $0x68] sm:$0xff]
  %v286 = vld [vmem:[%s2 + $0x70] sm:$0xff]
  %v287 = vld [vmem:[%s2 + $0x78] sm:$0xff]
  %v288 = vld [vmem:[%s2 + $0x80] sm:$0xff]
  %v289 = vld [vmem:[%s2 + $0x88] sm:$0xff]
  %v290 = vld [vmem:[%s2 + $0x90] sm:$0xff]
  %v291 = vld [vmem:[%s2 + $0x98] sm:$0xff]
  %v292 = vld [vmem:[%s2 + $0xa0] sm:$0xff]
  %v293 = vld [vmem:[%s2 + $0xa8] sm:$0xff]
  %v294 = vld [vmem:[%s2 + $0xb0] sm:$0xff]
  %v295 = vld [vmem:[%s2 + $0xb8] sm:$0xff]
  %v296 = vld [vmem:[%s2 + $0xc0] sm:$0xff]
  %v297 = vld [vmem:[%s2 + $0xc8] sm:$0xff]
  %v298 = vld [vmem:[%s2 + $0xd0] sm:$0xff]
  %v299 = vld [vmem:[%s2 + $0xd8] sm:$0xff]
  %v300 = vld [vmem:[%s2 + $0xe0] sm:$0xff]
  %v301 = vld [vmem:[%s2 + $0xe8] sm:$0xff]
  %v302 = vld [vmem:[%s2 + $0xf0] sm:$0xff]
  %v303 = vld [vmem:[%s2 + $0xf8] sm:$0xff]
  %v304 = vld [vmem:[%s2 + $0x100] sm:$0xff]
  %v305 = vld [vmem:[%s2 + $0x108] sm:$0xff]
  %v306 = vld [vmem:[%s2 + $0x110] sm:$0xff]
  %v307 = vld [vmem:[%s2 + $0x118] sm:$0xff]
  %v308 = vld [vmem:[%s2 + $0x120] sm:$0xff]
  %v309 = vld [vmem:[%s2 + $0x128] sm:$0xff]
  %v310 = vld [vmem:[%s2 + $0x130] sm:$0xff]
  %v311 = vld [vmem:[%s2 + $0x138] sm:$0xff]
  %v312 = vld [vmem:[%s2 + $0x140] sm:$0xff]
  %v313 = vld [vmem:[%s2 + $0x148] sm:$0xff]
  %v314 = vld [vmem:[%s2 + $0x150] sm:$0xff]
  %v315 = vld [vmem:[%s2 + $0x158] sm:$0xff]
  %v316 = vld [vmem:[%s2 + $0x160] sm:$0xff]
  %v317 = vld [vmem:[%s2 + $0x168] sm:$0xff]
  %v318 = vld [vmem:[%s2 + $0x170] sm:$0xff]
  %v319 = vld [vmem:[%s2 + $0x178] sm:$0xff]
  %v320 = vld [vmem:[%s4] sm:$0x1]
  %v321 = vld [vmem:[#allocation2] sm:$0xff]
  %s322 = smul.u32 0, 3
  %s323 = smul.addr %s322, 8
  %s324 = scalar_lea.vmem [#allocation3], %s323
  %v325 = vld [vmem:[%s324] sm:$0xff]
  %v326 = vld [vmem:[%s324 + $0x8] sm:$0xff]
  %v327 = vld [vmem:[%s324 + $0x10] sm:$0xff]
  %328 = vmatprep.subr.mxu0 %v273
  %329 = vmatpush1.msra.mxu0 %v272
  %330 = vmatprep.subr.mxu0 %v276
  %331 = vmatpush1.msra.mxu0 %v275
  %332 = vmatprep.subr.mxu0 %v279
  %333 = vmatpush1.msra.mxu0 %v278
  %334 = vmatprep.subr.mxu0 %v282
  %335 = vmatpush1.msra.mxu0 %v281
  %336 = vmatprep.subr.mxu0 %v285
  %337 = vmatpush1.msra.mxu0 %v284
  %338 = vmatprep.subr.mxu0 %v288
  %339 = vmatpush1.msra.mxu0 %v287
  %340 = vmatprep.subr.mxu0 %v291
  %341 = vmatpush1.msra.mxu0 %v290
  %342 = vmatprep.subr.mxu0 %v294
  %343 = vmatpush1.msra.mxu0 %v293
  %344 = vmatprep.subr.mxu0 %v297
  %345 = vmatpush1.msra.mxu0 %v296
  %346 = vmatprep.subr.mxu0 %v300
  %347 = vmatpush1.msra.mxu0 %v299
  %348 = vmatprep.subr.mxu0 %v303
  %349 = vmatpush1.msra.mxu0 %v302
  %350 = vmatprep.subr.mxu0 %v306
  %351 = vmatpush1.msra.mxu0 %v305
  %352 = vmatprep.subr.mxu0 %v309
  %353 = vmatpush1.msra.mxu0 %v308
  %354 = vmatprep.subr.mxu0 %v312
  %355 = vmatpush1.msra.mxu0 %v311
  %356 = vmatprep.subr.mxu0 %v315
  %357 = vmatpush1.msra.mxu0 %v314
  %358 = vmatprep.subr.mxu0 %v318
  %359 = vmatpush1.msra.mxu0 %v317
  %360 = vmatprep.subr.mxu0 0.0
  %361 = vmatpush1.msra.mxu0 0.0
  %362 = vmatprep.subr.mxu0 0.0
  %363 = vmatpush1.msra.mxu0 0.0
  %364 = vmatprep.subr.mxu0 0.0
  %365 = vmatpush1.msra.mxu0 0.0
  %366 = vmatprep.subr.mxu0 0.0
  %367 = vmatpush1.msra.mxu0 0.0
  %368 = vmatprep.subr.mxu0 0.0
  %369 = vmatpush1.msra.mxu0 0.0
  %370 = vmatprep.subr.mxu0 0.0
  %371 = vmatpush1.msra.mxu0 0.0
  %372 = vmatprep.subr.mxu0 0.0
  %373 = vmatpush1.msra.mxu0 0.0
  %374 = vmatprep.subr.mxu0 0.0
  %375 = vmatpush1.msra.mxu0 0.0
  %376 = vmatprep.subr.mxu0 0.0
  %377 = vmatpush1.msra.mxu0 0.0
  %378 = vmatprep.subr.mxu0 0.0
  %379 = vmatpush1.msra.mxu0 0.0
  %380 = vmatprep.subr.mxu0 0.0
  %381 = vmatpush1.msra.mxu0 0.0
  %382 = vmatprep.subr.mxu0 0.0
  %383 = vmatpush1.msra.mxu0 0.0
  %384 = vmatprep.subr.mxu0 0.0
  %385 = vmatpush1.msra.mxu0 0.0
  %386 = vmatprep.subr.mxu0 0.0
  %387 = vmatpush1.msra.mxu0 0.0
  %388 = vmatprep.subr.mxu0 0.0
  %389 = vmatpush1.msra.mxu0 0.0
  %390 = vmatprep.subr.mxu0 0.0
  %391 = vmatpush1.msra.mxu0 0.0
  %392 = vmatprep.mubr.f32.mxu0 0.0
  %393 = vmatmul.mubr.f32.gmra.mrb[0].mxu0 %v321
  %v394 = vpop.f32.mrb[0].mxu0
  %v395 = vadd.f32 0.0, %v394
  %v396 = vpop.f32.mrb[0].mxu0
  %v397 = vadd.f32 0.0, %v396
  %398 = vdwg.mxu0
  %399 = vmatprep.subr.mxu0 0.0
  %400 = vmatpush1.msra.mxu0 %v274
  %401 = vmatprep.subr.mxu0 0.0
  %402 = vmatpush1.msra.mxu0 %v277
  %403 = vmatprep.subr.mxu0 0.0
  %404 = vmatpush1.msra.mxu0 %v280
  %405 = vmatprep.subr.mxu0 0.0
  %406 = vmatpush1.msra.mxu0 %v283
  %407 = vmatprep.subr.mxu0 0.0
  %408 = vmatpush1.msra.mxu0 %v286
  %409 = vmatprep.subr.mxu0 0.0
  %410 = vmatpush1.msra.mxu0 %v289
  %411 = vmatprep.subr.mxu0 0.0
  %412 = vmatpush1.msra.mxu0 %v292
  %413 = vmatprep.subr.mxu0 0.0
  %414 = vmatpush1.msra.mxu0 %v295
  %415 = vmatprep.subr.mxu0 0.0
  %416 = vmatpush1.msra.mxu0 %v298
  %417 = vmatprep.subr.mxu0 0.0
  %418 = vmatpush1.msra.mxu0 %v301
  %419 = vmatprep.subr.mxu0 0.0
  %420 = vmatpush1.msra.mxu0 %v304
  %421 = vmatprep.subr.mxu0 0.0
  %422 = vmatpush1.msra.mxu0 %v307
  %423 = vmatprep.subr.mxu0 0.0
  %424 = vmatpush1.msra.mxu0 %v310
  %425 = vmatprep.subr.mxu0 0.0
  %426 = vmatpush1.msra.mxu0 %v313
  %427 = vmatprep.subr.mxu0 0.0
  %428 = vmatpush1.msra.mxu0 %v316
  %429 = vmatprep.subr.mxu0 0.0
  %430 = vmatpush1.msra.mxu0 %v319
  %431 = vmatprep.subr.mxu0 0.0
  %432 = vmatpush1.msra.mxu0 0.0
  %433 = vmatprep.subr.mxu0 0.0
  %434 = vmatpush1.msra.mxu0 0.0
  %435 = vmatprep.subr.mxu0 0.0
  %436 = vmatpush1.msra.mxu0 0.0
  %437 = vmatprep.subr.mxu0 0.0
  %438 = vmatpush1.msra.mxu0 0.0
  %439 = vmatprep.subr.mxu0 0.0
  %440 = vmatpush1.msra.mxu0 0.0
  %441 = vmatprep.subr.mxu0 0.0
  %442 = vmatpush1.msra.mxu0 0.0
  %443 = vmatprep.subr.mxu0 0.0
  %444 = vmatpush1.msra.mxu0 0.0
  %445 = vmatprep.subr.mxu0 0.0
  %446 = vmatpush1.msra.mxu0 0.0
  %447 = vmatprep.subr.mxu0 0.0
  %448 = vmatpush1.msra.mxu0 0.0
  %449 = vmatprep.subr.mxu0 0.0
  %450 = vmatpush1.msra.mxu0 0.0
  %451 = vmatprep.subr.mxu0 0.0
  %452 = vmatpush1.msra.mxu0 0.0
  %453 = vmatprep.subr.mxu0 0.0
  %454 = vmatpush1.msra.mxu0 0.0
  %455 = vmatprep.subr.mxu0 0.0
  %456 = vmatpush1.msra.mxu0 0.0
  %457 = vmatprep.subr.mxu0 0.0
  %458 = vmatpush1.msra.mxu0 0.0
  %459 = vmatprep.subr.mxu0 0.0
  %460 = vmatpush1.msra.mxu0 0.0
  %461 = vmatprep.subr.mxu0 0.0
  %462 = vmatpush1.msra.mxu0 0.0
  %463 = vmatprep.mubr.f32.mxu0 0.0
  %464 = vmatmul.mubr.f32.gmra.mrb[0].mxu0 %v321
  %v465 = vpop.f32.mrb[0].mxu0
  %v466 = vadd.f32 0.0, %v465
  %v467 = vpop.f32.mrb[0].mxu0
  %468 = vdwg.mxu0
  %v469 = vadd.f32 %v325, %v395
  %v470 = vxor.u32 %v469, 2147483648
  %v471 = vmul.f32 %v470, 1.442695
  %v472 = vpow.pop %v471
  %v473 = vadd.f32 %v472, 1.0
  %v474 = vrcp.pop %v473
  %v475 = vmul.f32 1.0, %v474
  %v476 = vadd.f32 %v326, %v397
  %v477 = vxor.u32 %v476, 2147483648
  %v478 = vmul.f32 %v477, 1.442695
  %v479 = vpow.pop %v478
  %v480 = vadd.f32 %v479, 1.0
  %v481 = vrcp.pop %v480
  %v482 = vmul.f32 1.0, %v481
  %v484 = vlaneseq
  %v485 = vshrl.u32 %v484, 7
  %v486 = vsub.s32 0, %v485
  %v487 = vrot.slane %v320, %v486
  %v489 = vadd.f32 %v466, %v487
  %v490 = vmul.f32 %v475, %v489
  %v491 = vadd.f32 %v327, %v490
  %v492 = vtanh.pop %v491
  %v493 = vsub.f32 1.0, %v482
  %v494 = vmul.f32 %v493, %v492
  %v495 = vmul.f32 %v482, %v321
  %v496 = vadd.f32 %v494, %v495
  %s497 = smul.u32 1, 3
  %s498 = smul.addr %s497, 8
  %s499 = scalar_lea.vmem [#allocation3], %s498
  %v500 = vld [vmem:[%s499] sm:$0xff]
  %v501 = vld [vmem:[%s499 + $0x8] sm:$0xff]
  %v502 = vld [vmem:[%s499 + $0x10] sm:$0xff]
  %503 = vmatprep.subr.mxu0 %v273
  %504 = vmatpush1.msra.mxu0 %v272
  %505 = vmatprep.subr.mxu0 %v276
  %506 = vmatpush1.msra.mxu0 %v275
  %507 = vmatprep.subr.mxu0 %v279
  %508 = vmatpush1.msra.mxu0 %v278
  %509 = vmatprep.subr.mxu0 %v282
  %510 = vmatpush1.msra.mxu0 %v281
  %511 = vmatprep.subr.mxu0 %v285
  %512 = vmatpush1.msra.mxu0 %v284
  %513 = vmatprep.subr.mxu0 %v288
  %514 = vmatpush1.msra.mxu0 %v287
  %515 = vmatprep.subr.mxu0 %v291
  %516 = vmatpush1.msra.mxu0 %v290
  %517 = vmatprep.subr.mxu0 %v294
  %518 = vmatpush1.msra.mxu0 %v293
  %519 = vmatprep.subr.mxu0 %v297
  %520 = vmatpush1.msra.mxu0 %v296
  %521 = vmatprep.subr.mxu0 %v300
  %522 = vmatpush1.msra.mxu0 %v299
  %523 = vmatprep.subr.mxu0 %v303
  %524 = vmatpush1.msra.mxu0 %v302
  %525 = vmatprep.subr.mxu0 %v306
  %526 = vmatpush1.msra.mxu0 %v305
  %527 = vmatprep.subr.mxu0 %v309
  %528 = vmatpush1.msra.mxu0 %v308
  %529 = vmatprep.subr.mxu0 %v312
  %530 = vmatpush1.msra.mxu0 %v311
  %531 = vmatprep.subr.mxu0 %v315
  %532 = vmatpush1.msra.mxu0 %v314
  %533 = vmatprep.subr.mxu0 %v318
  %534 = vmatpush1.msra.mxu0 %v317
  %535 = vmatprep.subr.mxu0 0.0
  %536 = vmatpush1.msra.mxu0 0.0
  %537 = vmatprep.subr.mxu0 0.0
  %538 = vmatpush1.msra.mxu0 0.0
  %539 = vmatprep.subr.mxu0 0.0
  %540 = vmatpush1.msra.mxu0 0.0
  %541 = vmatprep.subr.mxu0 0.0
  %542 = vmatpush1.msra.mxu0 0.0
  %543 = vmatprep.subr.mxu0 0.0
  %544 = vmatpush1.msra.mxu0 0.0
  %545 = vmatprep.subr.mxu0 0.0
  %546 = vmatpush1.msra.mxu0 0.0
  %547 = vmatprep.subr.mxu0 0.0
  %548 = vmatpush1.msra.mxu0 0.0
  %549 = vmatprep.subr.mxu0 0.0
  %550 = vmatpush1.msra.mxu0 0.0
  %551 = vmatprep.subr.mxu0 0.0
  %552 = vmatpush1.msra.mxu0 0.0
  %553 = vmatprep.subr.mxu0 0.0
  %554 = vmatpush1.msra.mxu0 0.0
  %555 = vmatprep.subr.mxu0 0.0
  %556 = vmatpush1.msra.mxu0 0.0
  %557 = vmatprep.subr.mxu0 0.0
  %558 = vmatpush1.msra.mxu0 0.0
  %559 = vmatprep.subr.mxu0 0.0
  %560 = vmatpush1.msra.mxu0 0.0
  %561 = vmatprep.subr.mxu0 0.0
  %562 = vmatpush1.msra.mxu0 0.0
  %563 = vmatprep.subr.mxu0 0.0
  %564 = vmatpush1.msra.mxu0 0.0
  %565 = vmatprep.subr.mxu0 0.0
  %566 = vmatpush1.msra.mxu0 0.0
  %567 = vmatprep.mubr.f32.mxu0 0.0
  %568 = vmatmul.mubr.f32.gmra.mrb[0].mxu0 %v496
  %v569 = vpop.f32.mrb[0].mxu0
  %v570 = vadd.f32 0.0, %v569
  %v571 = vpop.f32.mrb[0].mxu0
  %v572 = vadd.f32 0.0, %v571
  %573 = vdwg.mxu0
  %574 = vmatprep.subr.mxu0 0.0
  %575 = vmatpush1.msra.mxu0 %v274
  %576 = vmatprep.subr.mxu0 0.0
  %577 = vmatpush1.msra.mxu0 %v277
  %578 = vmatprep.subr.mxu0 0.0
  %579 = vmatpush1.msra.mxu0 %v280
  %580 = vmatprep.subr.mxu0 0.0
  %581 = vmatpush1.msra.mxu0 %v283
  %582 = vmatprep.subr.mxu0 0.0
  %583 = vmatpush1.msra.mxu0 %v286
  %584 = vmatprep.subr.mxu0 0.0
  %585 = vmatpush1.msra.mxu0 %v289
  %586 = vmatprep.subr.mxu0 0.0
  %587 = vmatpush1.msra.mxu0 %v292
  %588 = vmatprep.subr.mxu0 0.0
  %589 = vmatpush1.msra.mxu0 %v295
  %590 = vmatprep.subr.mxu0 0.0
  %591 = vmatpush1.msra.mxu0 %v298
  %592 = vmatprep.subr.mxu0 0.0
  %593 = vmatpush1.msra.mxu0 %v301
  %594 = vmatprep.subr.mxu0 0.0
  %595 = vmatpush1.msra.mxu0 %v304
  %596 = vmatprep.subr.mxu0 0.0
  %597 = vmatpush1.msra.mxu0 %v307
  %598 = vmatprep.subr.mxu0 0.0
  %599 = vmatpush1.msra.mxu0 %v310
  %600 = vmatprep.subr.mxu0 0.0
  %601 = vmatpush1.msra.mxu0 %v313
  %602 = vmatprep.subr.mxu0 0.0
  %603 = vmatpush1.msra.mxu0 %v316
  %604 = vmatprep.subr.mxu0 0.0
  %605 = vmatpush1.msra.mxu0 %v319
  %606 = vmatprep.subr.mxu0 0.0
  %607 = vmatpush1.msra.mxu0 0.0
  %608 = vmatprep.subr.mxu0 0.0
  %609 = vmatpush1.msra.mxu0 0.0
  %610 = vmatprep.subr.mxu0 0.0
  %611 = vmatpush1.msra.mxu0 0.0
  %612 = vmatprep.subr.mxu0 0.0
  %613 = vmatpush1.msra.mxu0 0.0
  %614 = vmatprep.subr.mxu0 0.0
  %615 = vmatpush1.msra.mxu0 0.0
  %616 = vmatprep.subr.mxu0 0.0
  %617 = vmatpush1.msra.mxu0 0.0
  %618 = vmatprep.subr.mxu0 0.0
  %619 = vmatpush1.msra.mxu0 0.0
  %620 = vmatprep.subr.mxu0 0.0
  %621 = vmatpush1.msra.mxu0 0.0
  %622 = vmatprep.subr.mxu0 0.0
  %623 = vmatpush1.msra.mxu0 0.0
  %624 = vmatprep.subr.mxu0 0.0
  %625 = vmatpush1.msra.mxu0 0.0
  %626 = vmatprep.subr.mxu0 0.0
  %627 = vmatpush1.msra.mxu0 0.0
  %628 = vmatprep.subr.mxu0 0.0
  %629 = vmatpush1.msra.mxu0 0.0
  %630 = vmatprep.subr.mxu0 0.0
  %631 = vmatpush1.msra.mxu0 0.0
  %632 = vmatprep.subr.mxu0 0.0
  %633 = vmatpush1.msra.mxu0 0.0
  %634 = vmatprep.subr.mxu0 0.0
  %635 = vmatpush1.msra.mxu0 0.0
  %636 = vmatprep.subr.mxu0 0.0
  %637 = vmatpush1.msra.mxu0 0.0
  %638 = vmatprep.mubr.f32.mxu0 0.0
  %639 = vmatmul.mubr.f32.gmra.mrb[0].mxu0 %v496
  %v640 = vpop.f32.mrb[0].mxu0
  %v641 = vadd.f32 0.0, %v640
  %v642 = vpop.f32.mrb[0].mxu0
  %643 = vdwg.mxu0
  %v644 = vadd.f32 %v500, %v570
  %v645 = vxor.u32 %v644, 2147483648
  %v646 = vmul.f32 %v645, 1.442695
  %v647 = vpow.pop %v646
  %v648 = vadd.f32 %v647, 1.0
  %v649 = vrcp.pop %v648
  %v650 = vmul.f32 1.0, %v649
  %v651 = vadd.f32 %v501, %v572
  %v652 = vxor.u32 %v651, 2147483648
  %v653 = vmul.f32 %v652, 1.442695
  %v654 = vpow.pop %v653
  %v655 = vadd.f32 %v654, 1.0
  %v656 = vrcp.pop %v655
  %v657 = vmul.f32 1.0, %v656
  %v658 = vadd.f32 %v641, %v487
  %v659 = vmul.f32 %v650, %v658
  %v660 = vadd.f32 %v502, %v659
  %v661 = vtanh.pop %v660
  %v662 = vsub.f32 1.0, %v657
  %v663 = vmul.f32 %v662, %v661
  %v664 = vmul.f32 %v657, %v496
  %v665 = vadd.f32 %v663, %v664
  %s666 = smul.u32 2, 3
  %s667 = smul.addr %s666, 8
  %s668 = scalar_lea.vmem [#allocation3], %s667
  %v669 = vld [vmem:[%s668] sm:$0xff]
  %v670 = vld [vmem:[%s668 + $0x8] sm:$0xff]
  %v671 = vld [vmem:[%s668 + $0x10] sm:$0xff]
  %672 = vmatprep.subr.mxu0 %v273
  %673 = vmatpush1.msra.mxu0 %v272
  %674 = vmatprep.subr.mxu0 %v276
  %675 = vmatpush1.msra.mxu0 %v275
  %676 = vmatprep.subr.mxu0 %v279
  %677 = vmatpush1.msra.mxu0 %v278
  %678 = vmatprep.subr.mxu0 %v282
  %679 = vmatpush1.msra.mxu0 %v281
  %680 = vmatprep.subr.mxu0 %v285
  %681 = vmatpush1.msra.mxu0 %v284
  %682 = vmatprep.subr.mxu0 %v288
  %683 = vmatpush1.msra.mxu0 %v287
  %684 = vmatprep.subr.mxu0 %v291
  %685 = vmatpush1.msra.mxu0 %v290
  %686 = vmatprep.subr.mxu0 %v294
  %687 = vmatpush1.msra.mxu0 %v293
  %688 = vmatprep.subr.mxu0 %v297
  %689 = vmatpush1.msra.mxu0 %v296
  %690 = vmatprep.subr.mxu0 %v300
  %691 = vmatpush1.msra.mxu0 %v299
  %692 = vmatprep.subr.mxu0 %v303
  %693 = vmatpush1.msra.mxu0 %v302
  %694 = vmatprep.subr.mxu0 %v306
  %695 = vmatpush1.msra.mxu0 %v305
  %696 = vmatprep.subr.mxu0 %v309
  %697 = vmatpush1.msra.mxu0 %v308
  %698 = vmatprep.subr.mxu0 %v312
  %699 = vmatpush1.msra.mxu0 %v311
  %700 = vmatprep.subr.mxu0 %v315
  %701 = vmatpush1.msra.mxu0 %v314
  %702 = vmatprep.subr.mxu0 %v318
  %703 = vmatpush1.msra.mxu0 %v317
  %704 = vmatprep.subr.mxu0 0.0
  %705 = vmatpush1.msra.mxu0 0.0
  %706 = vmatprep.subr.mxu0 0.0
  %707 = vmatpush1.msra.mxu0 0.0
  %708 = vmatprep.subr.mxu0 0.0
  %709 = vmatpush1.msra.mxu0 0.0
  %710 = vmatprep.subr.mxu0 0.0
  %711 = vmatpush1.msra.mxu0 0.0
  %712 = vmatprep.subr.mxu0 0.0
  %713 = vmatpush1.msra.mxu0 0.0
  %714 = vmatprep.subr.mxu0 0.0
  %715 = vmatpush1.msra.mxu0 0.0
  %716 = vmatprep.subr.mxu0 0.0
  %717 = vmatpush1.msra.mxu0 0.0
  %718 = vmatprep.subr.mxu0 0.0
  %719 = vmatpush1.msra.mxu0 0.0
  %720 = vmatprep.subr.mxu0 0.0
  %721 = vmatpush1.msra.mxu0 0.0
  %722 = vmatprep.subr.mxu0 0.0
  %723 = vmatpush1.msra.mxu0 0.0
  %724 = vmatprep.subr.mxu0 0.0
  %725 = vmatpush1.msra.mxu0 0.0
  %726 = vmatprep.subr.mxu0 0.0
  %727 = vmatpush1.msra.mxu0 0.0
  %728 = vmatprep.subr.mxu0 0.0
  %729 = vmatpush1.msra.mxu0 0.0
  %730 = vmatprep.subr.mxu0 0.0
  %731 = vmatpush1.msra.mxu0 0.0
  %732 = vmatprep.subr.mxu0 0.0
  %733 = vmatpush1.msra.mxu0 0.0
  %734 = vmatprep.subr.mxu0 0.0
  %735 = vmatpush1.msra.mxu0 0.0
  %736 = vmatprep.mubr.f32.mxu0 0.0
  %737 = vmatmul.mubr.f32.gmra.mrb[0].mxu0 %v665
  %v738 = vpop.f32.mrb[0].mxu0
  %v739 = vadd.f32 0.0, %v738
  %v740 = vpop.f32.mrb[0].mxu0
  %v741 = vadd.f32 0.0, %v740
  %742 = vdwg.mxu0
  %743 = vmatprep.subr.mxu0 0.0
  %744 = vmatpush1.msra.mxu0 %v274
  %745 = vmatprep.subr.mxu0 0.0
  %746 = vmatpush1.msra.mxu0 %v277
  %747 = vmatprep.subr.mxu0 0.0
  %748 = vmatpush1.msra.mxu0 %v280
  %749 = vmatprep.subr.mxu0 0.0
  %750 = vmatpush1.msra.mxu0 %v283
  %751 = vmatprep.subr.mxu0 0.0
  %752 = vmatpush1.msra.mxu0 %v286
  %753 = vmatprep.subr.mxu0 0.0
  %754 = vmatpush1.msra.mxu0 %v289
  %755 = vmatprep.subr.mxu0 0.0
  %756 = vmatpush1.msra.mxu0 %v292
  %757 = vmatprep.subr.mxu0 0.0
  %758 = vmatpush1.msra.mxu0 %v295
  %759 = vmatprep.subr.mxu0 0.0
  %760 = vmatpush1.msra.mxu0 %v298
  %761 = vmatprep.subr.mxu0 0.0
  %762 = vmatpush1.msra.mxu0 %v301
  %763 = vmatprep.subr.mxu0 0.0
  %764 = vmatpush1.msra.mxu0 %v304
  %765 = vmatprep.subr.mxu0 0.0
  %766 = vmatpush1.msra.mxu0 %v307
  %767 = vmatprep.subr.mxu0 0.0
  %768 = vmatpush1.msra.mxu0 %v310
  %769 = vmatprep.subr.mxu0 0.0
  %770 = vmatpush1.msra.mxu0 %v313
  %771 = vmatprep.subr.mxu0 0.0
  %772 = vmatpush1.msra.mxu0 %v316
  %773 = vmatprep.subr.mxu0 0.0
  %774 = vmatpush1.msra.mxu0 %v319
  %775 = vmatprep.subr.mxu0 0.0
  %776 = vmatpush1.msra.mxu0 0.0
  %777 = vmatprep.subr.mxu0 0.0
  %778 = vmatpush1.msra.mxu0 0.0
  %779 = vmatprep.subr.mxu0 0.0
  %780 = vmatpush1.msra.mxu0 0.0
  %781 = vmatprep.subr.mxu0 0.0
  %782 = vmatpush1.msra.mxu0 0.0
  %783 = vmatprep.subr.mxu0 0.0
  %784 = vmatpush1.msra.mxu0 0.0
  %785 = vmatprep.subr.mxu0 0.0
  %786 = vmatpush1.msra.mxu0 0.0
  %787 = vmatprep.subr.mxu0 0.0
  %788 = vmatpush1.msra.mxu0 0.0
  %789 = vmatprep.subr.mxu0 0.0
  %790 = vmatpush1.msra.mxu0 0.0
  %791 = vmatprep.subr.mxu0 0.0
  %792 = vmatpush1.msra.mxu0 0.0
  %793 = vmatprep.subr.mxu0 0.0
  %794 = vmatpush1.msra.mxu0 0.0
  %795 = vmatprep.subr.mxu0 0.0
  %796 = vmatpush1.msra.mxu0 0.0
  %797 = vmatprep.subr.mxu0 0.0
  %798 = vmatpush1.msra.mxu0 0.0
  %799 = vmatprep.subr.mxu0 0.0
  %800 = vmatpush1.msra.mxu0 0.0
  %801 = vmatprep.subr.mxu0 0.0
  %802 = vmatpush1.msra.mxu0 0.0
  %803 = vmatprep.subr.mxu0 0.0
  %804 = vmatpush1.msra.mxu0 0.0
  %805 = vmatprep.subr.mxu0 0.0
  %806 = vmatpush1.msra.mxu0 0.0
  %807 = vmatprep.mubr.f32.mxu0 0.0
  %808 = vmatmul.mubr.f32.gmra.mrb[0].mxu0 %v665
  %v809 = vpop.f32.mrb[0].mxu0
  %v810 = vadd.f32 0.0, %v809
  %v811 = vpop.f32.mrb[0].mxu0
  %812 = vdwg.mxu0
  %v813 = vadd.f32 %v669, %v739
  %v814 = vxor.u32 %v813, 2147483648
  %v815 = vmul.f32 %v814, 1.442695
  %v816 = vpow.pop %v815
  %v817 = vadd.f32 %v816, 1.0
  %v818 = vrcp.pop %v817
  %v819 = vmul.f32 1.0, %v818
  %v820 = vadd.f32 %v670, %v741
  %v821 = vxor.u32 %v820, 2147483648
  %v822 = vmul.f32 %v821, 1.442695
  %v823 = vpow.pop %v822
  %v824 = vadd.f32 %v823, 1.0
  %v825 = vrcp.pop %v824
  %v826 = vmul.f32 1.0, %v825
  %v827 = vadd.f32 %v810, %v487
  %v828 = vmul.f32 %v819, %v827
  %v829 = vadd.f32 %v671, %v828
  %v830 = vtanh.pop %v829
  %v831 = vsub.f32 1.0, %v826
  %v832 = vmul.f32 %v831, %v830
  %v833 = vmul.f32 %v826, %v665
  %v834 = vadd.f32 %v832, %v833
  %s835 = smul.u32 3, 3
  %s836 = smul.addr %s835, 8
  %s837 = scalar_lea.vmem [#allocation3], %s836
  %v838 = vld [vmem:[%s837] sm:$0xff]
  %v839 = vld [vmem:[%s837 + $0x8] sm:$0xff]
  %v840 = vld [vmem:[%s837 + $0x10] sm:$0xff]
  %841 = vmatprep.subr.mxu0 %v273
  %842 = vmatpush1.msra.mxu0 %v272
  %843 = vmatprep.subr.mxu0 %v276
  %844 = vmatpush1.msra.mxu0 %v275
  %845 = vmatprep.subr.mxu0 %v279
  %846 = vmatpush1.msra.mxu0 %v278
  %847 = vmatprep.subr.mxu0 %v282
  %848 = vmatpush1.msra.mxu0 %v281
  %849 = vmatprep.subr.mxu0 %v285
  %850 = vmatpush1.msra.mxu0 %v284
  %851 = vmatprep.subr.mxu0 %v288
  %852 = vmatpush1.msra.mxu0 %v287
  %853 = vmatprep.subr.mxu0 %v291
  %854 = vmatpush1.msra.mxu0 %v290
  %855 = vmatprep.subr.mxu0 %v294
  %856 = vmatpush1.msra.mxu0 %v293
  %857 = vmatprep.subr.mxu0 %v297
  %858 = vmatpush1.msra.mxu0 %v296
  %859 = vmatprep.subr.mxu0 %v300
  %860 = vmatpush1.msra.mxu0 %v299
  %861 = vmatprep.subr.mxu0 %v303
  %862 = vmatpush1.msra.mxu0 %v302
  %863 = vmatprep.subr.mxu0 %v306
  %864 = vmatpush1.msra.mxu0 %v305
  %865 = vmatprep.subr.mxu0 %v309
  %866 = vmatpush1.msra.mxu0 %v308
  %867 = vmatprep.subr.mxu0 %v312
  %868 = vmatpush1.msra.mxu0 %v311
  %869 = vmatprep.subr.mxu0 %v315
  %870 = vmatpush1.msra.mxu0 %v314
  %871 = vmatprep.subr.mxu0 %v318
  %872 = vmatpush1.msra.mxu0 %v317
  %873 = vmatprep.subr.mxu0 0.0
  %874 = vmatpush1.msra.mxu0 0.0
  %875 = vmatprep.subr.mxu0 0.0
  %876 = vmatpush1.msra.mxu0 0.0
  %877 = vmatprep.subr.mxu0 0.0
  %878 = vmatpush1.msra.mxu0 0.0
  %879 = vmatprep.subr.mxu0 0.0
  %880 = vmatpush1.msra.mxu0 0.0
  %881 = vmatprep.subr.mxu0 0.0
  %882 = vmatpush1.msra.mxu0 0.0
  %883 = vmatprep.subr.mxu0 0.0
  %884 = vmatpush1.msra.mxu0 0.0
  %885 = vmatprep.subr.mxu0 0.0
  %886 = vmatpush1.msra.mxu0 0.0
  %887 = vmatprep.subr.mxu0 0.0
  %888 = vmatpush1.msra.mxu0 0.0
  %889 = vmatprep.subr.mxu0 0.0
  %890 = vmatpush1.msra.mxu0 0.0
  %891 = vmatprep.subr.mxu0 0.0
  %892 = vmatpush1.msra.mxu0 0.0
  %893 = vmatprep.subr.mxu0 0.0
  %894 = vmatpush1.msra.mxu0 0.0
  %895 = vmatprep.subr.mxu0 0.0
  %896 = vmatpush1.msra.mxu0 0.0
  %897 = vmatprep.subr.mxu0 0.0
  %898 = vmatpush1.msra.mxu0 0.0
  %899 = vmatprep.subr.mxu0 0.0
  %900 = vmatpush1.msra.mxu0 0.0
  %901 = vmatprep.subr.mxu0 0.0
  %902 = vmatpush1.msra.mxu0 0.0
  %903 = vmatprep.subr.mxu0 0.0
  %904 = vmatpush1.msra.mxu0 0.0
  %905 = vmatprep.mubr.f32.mxu0 0.0
  %906 = vmatmul.mubr.f32.gmra.mrb[0].mxu0 %v834
  %v907 = vpop.f32.mrb[0].mxu0
  %v908 = vadd.f32 0.0, %v907
  %v909 = vpop.f32.mrb[0].mxu0
  %v910 = vadd.f32 0.0, %v909
  %911 = vdwg.mxu0
  %912 = vmatprep.subr.mxu0 0.0
  %913 = vmatpush1.msra.mxu0 %v274
  %914 = vmatprep.subr.mxu0 0.0
  %915 = vmatpush1.msra.mxu0 %v277
  %916 = vmatprep.subr.mxu0 0.0
  %917 = vmatpush1.msra.mxu0 %v280
  %918 = vmatprep.subr.mxu0 0.0
  %919 = vmatpush1.msra.mxu0 %v283
  %920 = vmatprep.subr.mxu0 0.0
  %921 = vmatpush1.msra.mxu0 %v286
  %922 = vmatprep.subr.mxu0 0.0
  %923 = vmatpush1.msra.mxu0 %v289
  %924 = vmatprep.subr.mxu0 0.0
  %925 = vmatpush1.msra.mxu0 %v292
  %926 = vmatprep.subr.mxu0 0.0
  %927 = vmatpush1.msra.mxu0 %v295
  %928 = vmatprep.subr.mxu0 0.0
  %929 = vmatpush1.msra.mxu0 %v298
  %930 = vmatprep.subr.mxu0 0.0
  %931 = vmatpush1.msra.mxu0 %v301
  %932 = vmatprep.subr.mxu0 0.0
  %933 = vmatpush1.msra.mxu0 %v304
  %934 = vmatprep.subr.mxu0 0.0
  %935 = vmatpush1.msra.mxu0 %v307
  %936 = vmatprep.subr.mxu0 0.0
  %937 = vmatpush1.msra.mxu0 %v310
  %938 = vmatprep.subr.mxu0 0.0
  %939 = vmatpush1.msra.mxu0 %v313
  %940 = vmatprep.subr.mxu0 0.0
  %941 = vmatpush1.msra.mxu0 %v316
  %942 = vmatprep.subr.mxu0 0.0
  %943 = vmatpush1.msra.mxu0 %v319
  %944 = vmatprep.subr.mxu0 0.0
  %945 = vmatpush1.msra.mxu0 0.0
  %946 = vmatprep.subr.mxu0 0.0
  %947 = vmatpush1.msra.mxu0 0.0
  %948 = vmatprep.subr.mxu0 0.0
  %949 = vmatpush1.msra.mxu0 0.0
  %950 = vmatprep.subr.mxu0 0.0
  %951 = vmatpush1.msra.mxu0 0.0
  %952 = vmatprep.subr.mxu0 0.0
  %953 = vmatpush1.msra.mxu0 0.0
  %954 = vmatprep.subr.mxu0 0.0
  %955 = vmatpush1.msra.mxu0 0.0
  %956 = vmatprep.subr.mxu0 0.0
  %957 = vmatpush1.msra.mxu0 0.0
  %958 = vmatprep.subr.mxu0 0.0
  %959 = vmatpush1.msra.mxu0 0.0
  %960 = vmatprep.subr.mxu0 0.0
  %961 = vmatpush1.msra.mxu0 0.0
  %962 = vmatprep.subr.mxu0 0.0
  %963 = vmatpush1.msra.mxu0 0.0
  %964 = vmatprep.subr.mxu0 0.0
  %965 = vmatpush1.msra.mxu0 0.0
  %966 = vmatprep.subr.mxu0 0.0
  %967 = vmatpush1.msra.mxu0 0.0
  %968 = vmatprep.subr.mxu0 0.0
  %969 = vmatpush1.msra.mxu0 0.0
  %970 = vmatprep.subr.mxu0 0.0
  %971 = vmatpush1.msra.mxu0 0.0
  %972 = vmatprep.subr.mxu0 0.0
  %973 = vmatpush1.msra.mxu0 0.0
  %974 = vmatprep.subr.mxu0 0.0
  %975 = vmatpush1.msra.mxu0 0.0
  %976 = vmatprep.mubr.f32.mxu0 0.0
  %977 = vmatmul.mubr.f32.gmra.mrb[0].mxu0 %v834
  %v978 = vpop.f32.mrb[0].mxu0
  %v979 = vadd.f32 0.0, %v978
  %v980 = vpop.f32.mrb[0].mxu0
  %981 = vdwg.mxu0
  %v982 = vadd.f32 %v838, %v908
  %v983 = vxor.u32 %v982, 2147483648
  %v984 = vmul.f32 %v983, 1.442695
  %v985 = vpow.pop %v984
  %v986 = vadd.f32 %v985, 1.0
  %v987 = vrcp.pop %v986
  %v988 = vmul.f32 1.0, %v987
  %v989 = vadd.f32 %v839, %v910
  %v990 = vxor.u32 %v989, 2147483648
  %v991 = vmul.f32 %v990, 1.442695
  %v992 = vpow.pop %v991
  %v993 = vadd.f32 %v992, 1.0
  %v994 = vrcp.pop %v993
  %v995 = vmul.f32 1.0, %v994
  %v996 = vadd.f32 %v979, %v487
  %v997 = vmul.f32 %v988, %v996
  %v998 = vadd.f32 %v840, %v997
  %v999 = vtanh.pop %v998
  %v1000 = vsub.f32 1.0, %v995
  %v1001 = vmul.f32 %v1000, %v999
  %v1002 = vmul.f32 %v995, %v834
  %v1003 = vadd.f32 %v1001, %v1002
  %s1004 = smul.u32 4, 3
  %s1005 = smul.addr %s1004, 8
  %s1006 = scalar_lea.vmem [#allocation3], %s1005
  %v1007 = vld [vmem:[%s1006] sm:$0xff]
  %v1008 = vld [vmem:[%s1006 + $0x8] sm:$0xff]
  %v1009 = vld [vmem:[%s1006 + $0x10] sm:$0xff]
  %1010 = vmatprep.subr.mxu0 %v273
  %1011 = vmatpush1.msra.mxu0 %v272
  %1012 = vmatprep.subr.mxu0 %v276
  %1013 = vmatpush1.msra.mxu0 %v275
  %1014 = vmatprep.subr.mxu0 %v279
  %1015 = vmatpush1.msra.mxu0 %v278
  %1016 = vmatprep.subr.mxu0 %v282
  %1017 = vmatpush1.msra.mxu0 %v281
  %1018 = vmatprep.subr.mxu0 %v285
  %1019 = vmatpush1.msra.mxu0 %v284
  %1020 = vmatprep.subr.mxu0 %v288
  %1021 = vmatpush1.msra.mxu0 %v287
  %1022 = vmatprep.subr.mxu0 %v291
  %1023 = vmatpush1.msra.mxu0 %v290
  %1024 = vmatprep.subr.mxu0 %v294
  %1025 = vmatpush1.msra.mxu0 %v293
  %1026 = vmatprep.subr.mxu0 %v297
  %1027 = vmatpush1.msra.mxu0 %v296
  %1028 = vmatprep.subr.mxu0 %v300
  %1029 = vmatpush1.msra.mxu0 %v299
  %1030 = vmatprep.subr.mxu0 %v303
  %1031 = vmatpush1.msra.mxu0 %v302
  %1032 = vmatprep.subr.mxu0 %v306
  %1033 = vmatpush1.msra.mxu0 %v305
  %1034 = vmatprep.subr.mxu0 %v309
  %1035 = vmatpush1.msra.mxu0 %v308
  %1036 = vmatprep.subr.mxu0 %v312
  %1037 = vmatpush1.msra.mxu0 %v311
  %1038 = vmatprep.subr.mxu0 %v315
  %1039 = vmatpush1.msra.mxu0 %v314
  %1040 = vmatprep.subr.mxu0 %v318
  %1041 = vmatpush1.msra.mxu0 %v317
  %1042 = vmatprep.subr.mxu0 0.0
  %1043 = vmatpush1.msra.mxu0 0.0
  %1044 = vmatprep.subr.mxu0 0.0
  %1045 = vmatpush1.msra.mxu0 0.0
  %1046 = vmatprep.subr.mxu0 0.0
  %1047 = vmatpush1.msra.mxu0 0.0
  %1048 = vmatprep.subr.mxu0 0.0
  %1049 = vmatpush1.msra.mxu0 0.0
  %1050 = vmatprep.subr.mxu0 0.0
  %1051 = vmatpush1.msra.mxu0 0.0
  %1052 = vmatprep.subr.mxu0 0.0
  %1053 = vmatpush1.msra.mxu0 0.0
  %1054 = vmatprep.subr.mxu0 0.0
  %1055 = vmatpush1.msra.mxu0 0.0
  %1056 = vmatprep.subr.mxu0 0.0
  %1057 = vmatpush1.msra.mxu0 0.0
  %1058 = vmatprep.subr.mxu0 0.0
  %1059 = vmatpush1.msra.mxu0 0.0
  %1060 = vmatprep.subr.mxu0 0.0
  %1061 = vmatpush1.msra.mxu0 0.0
  %1062 = vmatprep.subr.mxu0 0.0
  %1063 = vmatpush1.msra.mxu0 0.0
  %1064 = vmatprep.subr.mxu0 0.0
  %1065 = vmatpush1.msra.mxu0 0.0
  %1066 = vmatprep.subr.mxu0 0.0
  %1067 = vmatpush1.msra.mxu0 0.0
  %1068 = vmatprep.subr.mxu0 0.0
  %1069 = vmatpush1.msra.mxu0 0.0
  %1070 = vmatprep.subr.mxu0 0.0
  %1071 = vmatpush1.msra.mxu0 0.0
  %1072 = vmatprep.subr.mxu0 0.0
  %1073 = vmatpush1.msra.mxu0 0.0
  %1074 = vmatprep.mubr.f32.mxu0 0.0
  %1075 = vmatmul.mubr.f32.gmra.mrb[0].mxu0 %v1003
  %v1076 = vpop.f32.mrb[0].mxu0
  %v1077 = vadd.f32 0.0, %v1076
  %v1078 = vpop.f32.mrb[0].mxu0
  %v1079 = vadd.f32 0.0, %v1078
  %1080 = vdwg.mxu0
  %1081 = vmatprep.subr.mxu0 0.0
  %1082 = vmatpush1.msra.mxu0 %v274
  %1083 = vmatprep.subr.mxu0 0.0
  %1084 = vmatpush1.msra.mxu0 %v277
  %1085 = vmatprep.subr.mxu0 0.0
  %1086 = vmatpush1.msra.mxu0 %v280
  %1087 = vmatprep.subr.mxu0 0.0
  %1088 = vmatpush1.msra.mxu0 %v283
  %1089 = vmatprep.subr.mxu0 0.0
  %1090 = vmatpush1.msra.mxu0 %v286
  %1091 = vmatprep.subr.mxu0 0.0
  %1092 = vmatpush1.msra.mxu0 %v289
  %1093 = vmatprep.subr.mxu0 0.0
  %1094 = vmatpush1.msra.mxu0 %v292
  %1095 = vmatprep.subr.mxu0 0.0
  %1096 = vmatpush1.msra.mxu0 %v295
  %1097 = vmatprep.subr.mxu0 0.0
  %1098 = vmatpush1.msra.mxu0 %v298
  %1099 = vmatprep.subr.mxu0 0.0
  %1100 = vmatpush1.msra.mxu0 %v301
  %1101 = vmatprep.subr.mxu0 0.0
  %1102 = vmatpush1.msra.mxu0 %v304
  %1103 = vmatprep.subr.mxu0 0.0
  %1104 = vmatpush1.msra.mxu0 %v307
  %1105 = vmatprep.subr.mxu0 0.0
  %1106 = vmatpush1.msra.mxu0 %v310
  %1107 = vmatprep.subr.mxu0 0.0
  %1108 = vmatpush1.msra.mxu0 %v313
  %1109 = vmatprep.subr.mxu0 0.0
  %1110 = vmatpush1.msra.mxu0 %v316
  %1111 = vmatprep.subr.mxu0 0.0
  %1112 = vmatpush1.msra.mxu0 %v319
  %1113 = vmatprep.subr.mxu0 0.0
  %1114 = vmatpush1.msra.mxu0 0.0
  %1115 = vmatprep.subr.mxu0 0.0
  %1116 = vmatpush1.msra.mxu0 0.0
  %1117 = vmatprep.subr.mxu0 0.0
  %1118 = vmatpush1.msra.mxu0 0.0
  %1119 = vmatprep.subr.mxu0 0.0
  %1120 = vmatpush1.msra.mxu0 0.0
  %1121 = vmatprep.subr.mxu0 0.0
  %1122 = vmatpush1.msra.mxu0 0.0
  %1123 = vmatprep.subr.mxu0 0.0
  %1124 = vmatpush1.msra.mxu0 0.0
  %1125 = vmatprep.subr.mxu0 0.0
  %1126 = vmatpush1.msra.mxu0 0.0
  %1127 = vmatprep.subr.mxu0 0.0
  %1128 = vmatpush1.msra.mxu0 0.0
  %1129 = vmatprep.subr.mxu0 0.0
  %1130 = vmatpush1.msra.mxu0 0.0
  %1131 = vmatprep.subr.mxu0 0.0
  %1132 = vmatpush1.msra.mxu0 0.0
  %1133 = vmatprep.subr.mxu0 0.0
  %1134 = vmatpush1.msra.mxu0 0.0
  %1135 = vmatprep.subr.mxu0 0.0
  %1136 = vmatpush1.msra.mxu0 0.0
  %1137 = vmatprep.subr.mxu0 0.0
  %1138 = vmatpush1.msra.mxu0 0.0
  %1139 = vmatprep.subr.mxu0 0.0
  %1140 = vmatpush1.msra.mxu0 0.0
  %1141 = vmatprep.subr.mxu0 0.0
  %1142 = vmatpush1.msra.mxu0 0.0
  %1143 = vmatprep.subr.mxu0 0.0
  %1144 = vmatpush1.msra.mxu0 0.0
  %1145 = vmatprep.mubr.f32.mxu0 0.0
  %1146 = vmatmul.mubr.f32.gmra.mrb[0].mxu0 %v1003
  %v1147 = vpop.f32.mrb[0].mxu0
  %v1148 = vadd.f32 0.0, %v1147
  %v1149 = vpop.f32.mrb[0].mxu0
  %1150 = vdwg.mxu0
  %v1151 = vadd.f32 %v1007, %v1077
  %v1152 = vxor.u32 %v1151, 2147483648
  %v1153 = vmul.f32 %v1152, 1.442695
  %v1154 = vpow.pop %v1153
  %v1155 = vadd.f32 %v1154, 1.0
  %v1156 = vrcp.pop %v1155
  %v1157 = vmul.f32 1.0, %v1156
  %v1158 = vadd.f32 %v1008, %v1079
  %v1159 = vxor.u32 %v1158, 2147483648
  %v1160 = vmul.f32 %v1159, 1.442695
  %v1161 = vpow.pop %v1160
  %v1162 = vadd.f32 %v1161, 1.0
  %v1163 = vrcp.pop %v1162
  %v1164 = vmul.f32 1.0, %v1163
  %v1165 = vadd.f32 %v1148, %v487
  %v1166 = vmul.f32 %v1157, %v1165
  %v1167 = vadd.f32 %v1009, %v1166
  %v1168 = vtanh.pop %v1167
  %v1169 = vsub.f32 1.0, %v1164
  %v1170 = vmul.f32 %v1169, %v1168
  %v1171 = vmul.f32 %v1164, %v1003
  %v1172 = vadd.f32 %v1170, %v1171
  %s1173 = smul.u32 5, 3
  %s1174 = smul.addr %s1173, 8
  %s1175 = scalar_lea.vmem [#allocation3], %s1174
  %v1176 = vld [vmem:[%s1175] sm:$0xff]
  %v1177 = vld [vmem:[%s1175 + $0x8] sm:$0xff]
  %v1178 = vld [vmem:[%s1175 + $0x10] sm:$0xff]
  %1179 = vmatprep.subr.mxu0 %v273
  %1180 = vmatpush1.msra.mxu0 %v272
  %1181 = vmatprep.subr.mxu0 %v276
  %1182 = vmatpush1.msra.mxu0 %v275
  %1183 = vmatprep.subr.mxu0 %v279
  %1184 = vmatpush1.msra.mxu0 %v278
  %1185 = vmatprep.subr.mxu0 %v282
  %1186 = vmatpush1.msra.mxu0 %v281
  %1187 = vmatprep.subr.mxu0 %v285
  %1188 = vmatpush1.msra.mxu0 %v284
  %1189 = vmatprep.subr.mxu0 %v288
  %1190 = vmatpush1.msra.mxu0 %v287
  %1191 = vmatprep.subr.mxu0 %v291
  %1192 = vmatpush1.msra.mxu0 %v290
  %1193 = vmatprep.subr.mxu0 %v294
  %1194 = vmatpush1.msra.mxu0 %v293
  %1195 = vmatprep.subr.mxu0 %v297
  %1196 = vmatpush1.msra.mxu0 %v296
  %1197 = vmatprep.subr.mxu0 %v300
  %1198 = vmatpush1.msra.mxu0 %v299
  %1199 = vmatprep.subr.mxu0 %v303
  %1200 = vmatpush1.msra.mxu0 %v302
  %1201 = vmatprep.subr.mxu0 %v306
  %1202 = vmatpush1.msra.mxu0 %v305
  %1203 = vmatprep.subr.mxu0 %v309
  %1204 = vmatpush1.msra.mxu0 %v308
  %1205 = vmatprep.subr.mxu0 %v312
  %1206 = vmatpush1.msra.mxu0 %v311
  %1207 = vmatprep.subr.mxu0 %v315
  %1208 = vmatpush1.msra.mxu0 %v314
  %1209 = vmatprep.subr.mxu0 %v318
  %1210 = vmatpush1.msra.mxu0 %v317
  %1211 = vmatprep.subr.mxu0 0.0
  %1212 = vmatpush1.msra.mxu0 0.0
  %1213 = vmatprep.subr.mxu0 0.0
  %1214 = vmatpush1.msra.mxu0 0.0
  %1215 = vmatprep.subr.mxu0 0.0
  %1216 = vmatpush1.msra.mxu0 0.0
  %1217 = vmatprep.subr.mxu0 0.0
  %1218 = vmatpush1.msra.mxu0 0.0
  %1219 = vmatprep.subr.mxu0 0.0
  %1220 = vmatpush1.msra.mxu0 0.0
  %1221 = vmatprep.subr.mxu0 0.0
  %1222 = vmatpush1.msra.mxu0 0.0
  %1223 = vmatprep.subr.mxu0 0.0
  %1224 = vmatpush1.msra.mxu0 0.0
  %1225 = vmatprep.subr.mxu0 0.0
  %1226 = vmatpush1.msra.mxu0 0.0
  %1227 = vmatprep.subr.mxu0 0.0
  %1228 = vmatpush1.msra.mxu0 0.0
  %1229 = vmatprep.subr.mxu0 0.0
  %1230 = vmatpush1.msra.mxu0 0.0
  %1231 = vmatprep.subr.mxu0 0.0
  %1232 = vmatpush1.msra.mxu0 0.0
  %1233 = vmatprep.subr.mxu0 0.0
  %1234 = vmatpush1.msra.mxu0 0.0
  %1235 = vmatprep.subr.mxu0 0.0
  %1236 = vmatpush1.msra.mxu0 0.0
  %1237 = vmatprep.subr.mxu0 0.0
  %1238 = vmatpush1.msra.mxu0 0.0
  %1239 = vmatprep.subr.mxu0 0.0
  %1240 = vmatpush1.msra.mxu0 0.0
  %1241 = vmatprep.subr.mxu0 0.0
  %1242 = vmatpush1.msra.mxu0 0.0
  %1243 = vmatprep.mubr.f32.mxu0 0.0
  %1244 = vmatmul.mubr.f32.gmra.mrb[0].mxu0 %v1172
  %v1245 = vpop.f32.mrb[0].mxu0
  %v1246 = vadd.f32 0.0, %v1245
  %v1247 = vpop.f32.mrb[0].mxu0
  %v1248 = vadd.f32 0.0, %v1247
  %1249 = vdwg.mxu0
  %1250 = vmatprep.subr.mxu0 0.0
  %1251 = vmatpush1.msra.mxu0 %v274
  %1252 = vmatprep.subr.mxu0 0.0
  %1253 = vmatpush1.msra.mxu0 %v277
  %1254 = vmatprep.subr.mxu0 0.0
  %1255 = vmatpush1.msra.mxu0 %v280
  %1256 = vmatprep.subr.mxu0 0.0
  %1257 = vmatpush1.msra.mxu0 %v283
  %1258 = vmatprep.subr.mxu0 0.0
  %1259 = vmatpush1.msra.mxu0 %v286
  %1260 = vmatprep.subr.mxu0 0.0
  %1261 = vmatpush1.msra.mxu0 %v289
  %1262 = vmatprep.subr.mxu0 0.0
  %1263 = vmatpush1.msra.mxu0 %v292
  %1264 = vmatprep.subr.mxu0 0.0
  %1265 = vmatpush1.msra.mxu0 %v295
  %1266 = vmatprep.subr.mxu0 0.0
  %1267 = vmatpush1.msra.mxu0 %v298
  %1268 = vmatprep.subr.mxu0 0.0
  %1269 = vmatpush1.msra.mxu0 %v301
  %1270 = vmatprep.subr.mxu0 0.0
  %1271 = vmatpush1.msra.mxu0 %v304
  %1272 = vmatprep.subr.mxu0 0.0
  %1273 = vmatpush1.msra.mxu0 %v307
  %1274 = vmatprep.subr.mxu0 0.0
  %1275 = vmatpush1.msra.mxu0 %v310
  %1276 = vmatprep.subr.mxu0 0.0
  %1277 = vmatpush1.msra.mxu0 %v313
  %1278 = vmatprep.subr.mxu0 0.0
  %1279 = vmatpush1.msra.mxu0 %v316
  %1280 = vmatprep.subr.mxu0 0.0
  %1281 = vmatpush1.msra.mxu0 %v319
  %1282 = vmatprep.subr.mxu0 0.0
  %1283 = vmatpush1.msra.mxu0 0.0
  %1284 = vmatprep.subr.mxu0 0.0
  %1285 = vmatpush1.msra.mxu0 0.0
  %1286 = vmatprep.subr.mxu0 0.0
  %1287 = vmatpush1.msra.mxu0 0.0
  %1288 = vmatprep.subr.mxu0 0.0
  %1289 = vmatpush1.msra.mxu0 0.0
  %1290 = vmatprep.subr.mxu0 0.0
  %1291 = vmatpush1.msra.mxu0 0.0
  %1292 = vmatprep.subr.mxu0 0.0
  %1293 = vmatpush1.msra.mxu0 0.0
  %1294 = vmatprep.subr.mxu0 0.0
  %1295 = vmatpush1.msra.mxu0 0.0
  %1296 = vmatprep.subr.mxu0 0.0
  %1297 = vmatpush1.msra.mxu0 0.0
  %1298 = vmatprep.subr.mxu0 0.0
  %1299 = vmatpush1.msra.mxu0 0.0
  %1300 = vmatprep.subr.mxu0 0.0
  %1301 = vmatpush1.msra.mxu0 0.0
  %1302 = vmatprep.subr.mxu0 0.0
  %1303 = vmatpush1.msra.mxu0 0.0
  %1304 = vmatprep.subr.mxu0 0.0
  %1305 = vmatpush1.msra.mxu0 0.0
  %1306 = vmatprep.subr.mxu0 0.0
  %1307 = vmatpush1.msra.mxu0 0.0
  %1308 = vmatprep.subr.mxu0 0.0
  %1309 = vmatpush1.msra.mxu0 0.0
  %1310 = vmatprep.subr.mxu0 0.0
  %1311 = vmatpush1.msra.mxu0 0.0
  %1312 = vmatprep.subr.mxu0 0.0
  %1313 = vmatpush1.msra.mxu0 0.0
  %1314 = vmatprep.mubr.f32.mxu0 0.0
  %1315 = vmatmul.mubr.f32.gmra.mrb[0].mxu0 %v1172
  %v1316 = vpop.f32.mrb[0].mxu0
  %v1317 = vadd.f32 0.0, %v1316
  %v1318 = vpop.f32.mrb[0].mxu0
  %1319 = vdwg.mxu0
  %v1320 = vadd.f32 %v1176, %v1246
  %v1321 = vxor.u32 %v1320, 2147483648
  %v1322 = vmul.f32 %v1321, 1.442695
  %v1323 = vpow.pop %v1322
  %v1324 = vadd.f32 %v1323, 1.0
  %v1325 = vrcp.pop %v1324
  %v1326 = vmul.f32 1.0, %v1325
  %v1327 = vadd.f32 %v1177, %v1248
  %v1328 = vxor.u32 %v1327, 2147483648
  %v1329 = vmul.f32 %v1328, 1.442695
  %v1330 = vpow.pop %v1329
  %v1331 = vadd.f32 %v1330, 1.0
  %v1332 = vrcp.pop %v1331
  %v1333 = vmul.f32 1.0, %v1332
  %v1334 = vadd.f32 %v1317, %v487
  %v1335 = vmul.f32 %v1326, %v1334
  %v1336 = vadd.f32 %v1178, %v1335
  %v1337 = vtanh.pop %v1336
  %v1338 = vsub.f32 1.0, %v1333
  %v1339 = vmul.f32 %v1338, %v1337
  %v1340 = vmul.f32 %v1333, %v1172
  %v1341 = vadd.f32 %v1339, %v1340
  %s1342 = smul.u32 6, 3
  %s1343 = smul.addr %s1342, 8
  %s1344 = scalar_lea.vmem [#allocation3], %s1343
  %v1345 = vld [vmem:[%s1344] sm:$0xff]
  %v1346 = vld [vmem:[%s1344 + $0x8] sm:$0xff]
  %v1347 = vld [vmem:[%s1344 + $0x10] sm:$0xff]
  %1348 = vmatprep.subr.mxu0 %v273
  %1349 = vmatpush1.msra.mxu0 %v272
  %1350 = vmatprep.subr.mxu0 %v276
  %1351 = vmatpush1.msra.mxu0 %v275
  %1352 = vmatprep.subr.mxu0 %v279
  %1353 = vmatpush1.msra.mxu0 %v278
  %1354 = vmatprep.subr.mxu0 %v282
  %1355 = vmatpush1.msra.mxu0 %v281
  %1356 = vmatprep.subr.mxu0 %v285
  %1357 = vmatpush1.msra.mxu0 %v284
  %1358 = vmatprep.subr.mxu0 %v288
  %1359 = vmatpush1.msra.mxu0 %v287
  %1360 = vmatprep.subr.mxu0 %v291
  %1361 = vmatpush1.msra.mxu0 %v290
  %1362 = vmatprep.subr.mxu0 %v294
  %1363 = vmatpush1.msra.mxu0 %v293
  %1364 = vmatprep.subr.mxu0 %v297
  %1365 = vmatpush1.msra.mxu0 %v296
  %1366 = vmatprep.subr.mxu0 %v300
  %1367 = vmatpush1.msra.mxu0 %v299
  %1368 = vmatprep.subr.mxu0 %v303
  %1369 = vmatpush1.msra.mxu0 %v302
  %1370 = vmatprep.subr.mxu0 %v306
  %1371 = vmatpush1.msra.mxu0 %v305
  %1372 = vmatprep.subr.mxu0 %v309
  %1373 = vmatpush1.msra.mxu0 %v308
  %1374 = vmatprep.subr.mxu0 %v312
  %1375 = vmatpush1.msra.mxu0 %v311
  %1376 = vmatprep.subr.mxu0 %v315
  %1377 = vmatpush1.msra.mxu0 %v314
  %1378 = vmatprep.subr.mxu0 %v318
  %1379 = vmatpush1.msra.mxu0 %v317
  %1380 = vmatprep.subr.mxu0 0.0
  %1381 = vmatpush1.msra.mxu0 0.0
  %1382 = vmatprep.subr.mxu0 0.0
  %1383 = vmatpush1.msra.mxu0 0.0
  %1384 = vmatprep.subr.mxu0 0.0
  %1385 = vmatpush1.msra.mxu0 0.0
  %1386 = vmatprep.subr.mxu0 0.0
  %1387 = vmatpush1.msra.mxu0 0.0
  %1388 = vmatprep.subr.mxu0 0.0
  %1389 = vmatpush1.msra.mxu0 0.0
  %1390 = vmatprep.subr.mxu0 0.0
  %1391 = vmatpush1.msra.mxu0 0.0
  %1392 = vmatprep.subr.mxu0 0.0
  %1393 = vmatpush1.msra.mxu0 0.0
  %1394 = vmatprep.subr.mxu0 0.0
  %1395 = vmatpush1.msra.mxu0 0.0
  %1396 = vmatprep.subr.mxu0 0.0
  %1397 = vmatpush1.msra.mxu0 0.0
  %1398 = vmatprep.subr.mxu0 0.0
  %1399 = vmatpush1.msra.mxu0 0.0
  %1400 = vmatprep.subr.mxu0 0.0
  %1401 = vmatpush1.msra.mxu0 0.0
  %1402 = vmatprep.subr.mxu0 0.0
  %1403 = vmatpush1.msra.mxu0 0.0
  %1404 = vmatprep.subr.mxu0 0.0
  %1405 = vmatpush1.msra.mxu0 0.0
  %1406 = vmatprep.subr.mxu0 0.0
  %1407 = vmatpush1.msra.mxu0 0.0
  %1408 = vmatprep.subr.mxu0 0.0
  %1409 = vmatpush1.msra.mxu0 0.0
  %1410 = vmatprep.subr.mxu0 0.0
  %1411 = vmatpush1.msra.mxu0 0.0
  %1412 = vmatprep.mubr.f32.mxu0 0.0
  %1413 = vmatmul.mubr.f32.gmra.mrb[0].mxu0 %v1341
  %v1414 = vpop.f32.mrb[0].mxu0
  %v1415 = vadd.f32 0.0, %v1414
  %v1416 = vpop.f32.mrb[0].mxu0
  %v1417 = vadd.f32 0.0, %v1416
  %1418 = vdwg.mxu0
  %1419 = vmatprep.subr.mxu0 0.0
  %1420 = vmatpush1.msra.mxu0 %v274
  %1421 = vmatprep.subr.mxu0 0.0
  %1422 = vmatpush1.msra.mxu0 %v277
  %1423 = vmatprep.subr.mxu0 0.0
  %1424 = vmatpush1.msra.mxu0 %v280
  %1425 = vmatprep.subr.mxu0 0.0
  %1426 = vmatpush1.msra.mxu0 %v283
  %1427 = vmatprep.subr.mxu0 0.0
  %1428 = vmatpush1.msra.mxu0 %v286
  %1429 = vmatprep.subr.mxu0 0.0
  %1430 = vmatpush1.msra.mxu0 %v289
  %1431 = vmatprep.subr.mxu0 0.0
  %1432 = vmatpush1.msra.mxu0 %v292
  %1433 = vmatprep.subr.mxu0 0.0
  %1434 = vmatpush1.msra.mxu0 %v295
  %1435 = vmatprep.subr.mxu0 0.0
  %1436 = vmatpush1.msra.mxu0 %v298
  %1437 = vmatprep.subr.mxu0 0.0
  %1438 = vmatpush1.msra.mxu0 %v301
  %1439 = vmatprep.subr.mxu0 0.0
  %1440 = vmatpush1.msra.mxu0 %v304
  %1441 = vmatprep.subr.mxu0 0.0
  %1442 = vmatpush1.msra.mxu0 %v307
  %1443 = vmatprep.subr.mxu0 0.0
  %1444 = vmatpush1.msra.mxu0 %v310
  %1445 = vmatprep.subr.mxu0 0.0
  %1446 = vmatpush1.msra.mxu0 %v313
  %1447 = vmatprep.subr.mxu0 0.0
  %1448 = vmatpush1.msra.mxu0 %v316
  %1449 = vmatprep.subr.mxu0 0.0
  %1450 = vmatpush1.msra.mxu0 %v319
  %1451 = vmatprep.subr.mxu0 0.0
  %1452 = vmatpush1.msra.mxu0 0.0
  %1453 = vmatprep.subr.mxu0 0.0
  %1454 = vmatpush1.msra.mxu0 0.0
  %1455 = vmatprep.subr.mxu0 0.0
  %1456 = vmatpush1.msra.mxu0 0.0
  %1457 = vmatprep.subr.mxu0 0.0
  %1458 = vmatpush1.msra.mxu0 0.0
  %1459 = vmatprep.subr.mxu0 0.0
  %1460 = vmatpush1.msra.mxu0 0.0
  %1461 = vmatprep.subr.mxu0 0.0
  %1462 = vmatpush1.msra.mxu0 0.0
  %1463 = vmatprep.subr.mxu0 0.0
  %1464 = vmatpush1.msra.mxu0 0.0
  %1465 = vmatprep.subr.mxu0 0.0
  %1466 = vmatpush1.msra.mxu0 0.0
  %1467 = vmatprep.subr.mxu0 0.0
  %1468 = vmatpush1.msra.mxu0 0.0
  %1469 = vmatprep.subr.mxu0 0.0
  %1470 = vmatpush1.msra.mxu0 0.0
  %1471 = vmatprep.subr.mxu0 0.0
  %1472 = vmatpush1.msra.mxu0 0.0
  %1473 = vmatprep.subr.mxu0 0.0
  %1474 = vmatpush1.msra.mxu0 0.0
  %1475 = vmatprep.subr.mxu0 0.0
  %1476 = vmatpush1.msra.mxu0 0.0
  %1477 = vmatprep.subr.mxu0 0.0
  %1478 = vmatpush1.msra.mxu0 0.0
  %1479 = vmatprep.subr.mxu0 0.0
  %1480 = vmatpush1.msra.mxu0 0.0
  %1481 = vmatprep.subr.mxu0 0.0
  %1482 = vmatpush1.msra.mxu0 0.0
  %1483 = vmatprep.mubr.f32.mxu0 0.0
  %1484 = vmatmul.mubr.f32.gmra.mrb[0].mxu0 %v1341
  %v1485 = vpop.f32.mrb[0].mxu0
  %v1486 = vadd.f32 0.0, %v1485
  %v1487 = vpop.f32.mrb[0].mxu0
  %1488 = vdwg.mxu0
  %v1489 = vadd.f32 %v1345, %v1415
  %v1490 = vxor.u32 %v1489, 2147483648
  %v1491 = vmul.f32 %v1490, 1.442695
  %v1492 = vpow.pop %v1491
  %v1493 = vadd.f32 %v1492, 1.0
  %v1494 = vrcp.pop %v1493
  %v1495 = vmul.f32 1.0, %v1494
  %v1496 = vadd.f32 %v1346, %v1417
  %v1497 = vxor.u32 %v1496, 2147483648
  %v1498 = vmul.f32 %v1497, 1.442695
  %v1499 = vpow.pop %v1498
  %v1500 = vadd.f32 %v1499, 1.0
  %v1501 = vrcp.pop %v1500
  %v1502 = vmul.f32 1.0, %v1501
  %v1503 = vadd.f32 %v1486, %v487
  %v1504 = vmul.f32 %v1495, %v1503
  %v1505 = vadd.f32 %v1347, %v1504
  %v1506 = vtanh.pop %v1505
  %v1507 = vsub.f32 1.0, %v1502
  %v1508 = vmul.f32 %v1507, %v1506
  %v1509 = vmul.f32 %v1502, %v1341
  %v1510 = vadd.f32 %v1508, %v1509
  %s1511 = smul.u32 7, 3
  %s1512 = smul.addr %s1511, 8
  %s1513 = scalar_lea.vmem [#allocation3], %s1512
  %v1514 = vld [vmem:[%s1513] sm:$0xff]
  %v1515 = vld [vmem:[%s1513 + $0x8] sm:$0xff]
  %v1516 = vld [vmem:[%s1513 + $0x10] sm:$0xff]
  %1517 = vmatprep.subr.mxu0 %v273
  %1518 = vmatpush1.msra.mxu0 %v272
  %1519 = vmatprep.subr.mxu0 %v276
  %1520 = vmatpush1.msra.mxu0 %v275
  %1521 = vmatprep.subr.mxu0 %v279
  %1522 = vmatpush1.msra.mxu0 %v278
  %1523 = vmatprep.subr.mxu0 %v282
  %1524 = vmatpush1.msra.mxu0 %v281
  %1525 = vmatprep.subr.mxu0 %v285
  %1526 = vmatpush1.msra.mxu0 %v284
  %1527 = vmatprep.subr.mxu0 %v288
  %1528 = vmatpush1.msra.mxu0 %v287
  %1529 = vmatprep.subr.mxu0 %v291
  %1530 = vmatpush1.msra.mxu0 %v290
  %1531 = vmatprep.subr.mxu0 %v294
  %1532 = vmatpush1.msra.mxu0 %v293
  %1533 = vmatprep.subr.mxu0 %v297
  %1534 = vmatpush1.msra.mxu0 %v296
  %1535 = vmatprep.subr.mxu0 %v300
  %1536 = vmatpush1.msra.mxu0 %v299
  %1537 = vmatprep.subr.mxu0 %v303
  %1538 = vmatpush1.msra.mxu0 %v302
  %1539 = vmatprep.subr.mxu0 %v306
  %1540 = vmatpush1.msra.mxu0 %v305
  %1541 = vmatprep.subr.mxu0 %v309
  %1542 = vmatpush1.msra.mxu0 %v308
  %1543 = vmatprep.subr.mxu0 %v312
  %1544 = vmatpush1.msra.mxu0 %v311
  %1545 = vmatprep.subr.mxu0 %v315
  %1546 = vmatpush1.msra.mxu0 %v314
  %1547 = vmatprep.subr.mxu0 %v318
  %1548 = vmatpush1.msra.mxu0 %v317
  %1549 = vmatprep.subr.mxu0 0.0
  %1550 = vmatpush1.msra.mxu0 0.0
  %1551 = vmatprep.subr.mxu0 0.0
  %1552 = vmatpush1.msra.mxu0 0.0
  %1553 = vmatprep.subr.mxu0 0.0
  %1554 = vmatpush1.msra.mxu0 0.0
  %1555 = vmatprep.subr.mxu0 0.0
  %1556 = vmatpush1.msra.mxu0 0.0
  %1557 = vmatprep.subr.mxu0 0.0
  %1558 = vmatpush1.msra.mxu0 0.0
  %1559 = vmatprep.subr.mxu0 0.0
  %1560 = vmatpush1.msra.mxu0 0.0
  %1561 = vmatprep.subr.mxu0 0.0
  %1562 = vmatpush1.msra.mxu0 0.0
  %1563 = vmatprep.subr.mxu0 0.0
  %1564 = vmatpush1.msra.mxu0 0.0
  %1565 = vmatprep.subr.mxu0 0.0
  %1566 = vmatpush1.msra.mxu0 0.0
  %1567 = vmatprep.subr.mxu0 0.0
  %1568 = vmatpush1.msra.mxu0 0.0
  %1569 = vmatprep.subr.mxu0 0.0
  %1570 = vmatpush1.msra.mxu0 0.0
  %1571 = vmatprep.subr.mxu0 0.0
  %1572 = vmatpush1.msra.mxu0 0.0
  %1573 = vmatprep.subr.mxu0 0.0
  %1574 = vmatpush1.msra.mxu0 0.0
  %1575 = vmatprep.subr.mxu0 0.0
  %1576 = vmatpush1.msra.mxu0 0.0
  %1577 = vmatprep.subr.mxu0 0.0
  %1578 = vmatpush1.msra.mxu0 0.0
  %1579 = vmatprep.subr.mxu0 0.0
  %1580 = vmatpush1.msra.mxu0 0.0
  %1581 = vmatprep.mubr.f32.mxu0 0.0
  %1582 = vmatmul.mubr.f32.gmra.mrb[0].mxu0 %v1510
  %v1583 = vpop.f32.mrb[0].mxu0
  %v1584 = vadd.f32 0.0, %v1583
  %v1585 = vpop.f32.mrb[0].mxu0
  %v1586 = vadd.f32 0.0, %v1585
  %1587 = vdwg.mxu0
  %1588 = vmatprep.subr.mxu0 0.0
  %1589 = vmatpush1.msra.mxu0 %v274
  %1590 = vmatprep.subr.mxu0 0.0
  %1591 = vmatpush1.msra.mxu0 %v277
  %1592 = vmatprep.subr.mxu0 0.0
  %1593 = vmatpush1.msra.mxu0 %v280
  %1594 = vmatprep.subr.mxu0 0.0
  %1595 = vmatpush1.msra.mxu0 %v283
  %1596 = vmatprep.subr.mxu0 0.0
  %1597 = vmatpush1.msra.mxu0 %v286
  %1598 = vmatprep.subr.mxu0 0.0
  %1599 = vmatpush1.msra.mxu0 %v289
  %1600 = vmatprep.subr.mxu0 0.0
  %1601 = vmatpush1.msra.mxu0 %v292
  %1602 = vmatprep.subr.mxu0 0.0
  %1603 = vmatpush1.msra.mxu0 %v295
  %1604 = vmatprep.subr.mxu0 0.0
  %1605 = vmatpush1.msra.mxu0 %v298
  %1606 = vmatprep.subr.mxu0 0.0
  %1607 = vmatpush1.msra.mxu0 %v301
  %1608 = vmatprep.subr.mxu0 0.0
  %1609 = vmatpush1.msra.mxu0 %v304
  %1610 = vmatprep.subr.mxu0 0.0
  %1611 = vmatpush1.msra.mxu0 %v307
  %1612 = vmatprep.subr.mxu0 0.0
  %1613 = vmatpush1.msra.mxu0 %v310
  %1614 = vmatprep.subr.mxu0 0.0
  %1615 = vmatpush1.msra.mxu0 %v313
  %1616 = vmatprep.subr.mxu0 0.0
  %1617 = vmatpush1.msra.mxu0 %v316
  %1618 = vmatprep.subr.mxu0 0.0
  %1619 = vmatpush1.msra.mxu0 %v319
  %1620 = vmatprep.subr.mxu0 0.0
  %1621 = vmatpush1.msra.mxu0 0.0
  %1622 = vmatprep.subr.mxu0 0.0
  %1623 = vmatpush1.msra.mxu0 0.0
  %1624 = vmatprep.subr.mxu0 0.0
  %1625 = vmatpush1.msra.mxu0 0.0
  %1626 = vmatprep.subr.mxu0 0.0
  %1627 = vmatpush1.msra.mxu0 0.0
  %1628 = vmatprep.subr.mxu0 0.0
  %1629 = vmatpush1.msra.mxu0 0.0
  %1630 = vmatprep.subr.mxu0 0.0
  %1631 = vmatpush1.msra.mxu0 0.0
  %1632 = vmatprep.subr.mxu0 0.0
  %1633 = vmatpush1.msra.mxu0 0.0
  %1634 = vmatprep.subr.mxu0 0.0
  %1635 = vmatpush1.msra.mxu0 0.0
  %1636 = vmatprep.subr.mxu0 0.0
  %1637 = vmatpush1.msra.mxu0 0.0
  %1638 = vmatprep.subr.mxu0 0.0
  %1639 = vmatpush1.msra.mxu0 0.0
  %1640 = vmatprep.subr.mxu0 0.0
  %1641 = vmatpush1.msra.mxu0 0.0
  %1642 = vmatprep.subr.mxu0 0.0
  %1643 = vmatpush1.msra.mxu0 0.0
  %1644 = vmatprep.subr.mxu0 0.0
  %1645 = vmatpush1.msra.mxu0 0.0
  %1646 = vmatprep.subr.mxu0 0.0
  %1647 = vmatpush1.msra.mxu0 0.0
  %1648 = vmatprep.subr.mxu0 0.0
  %1649 = vmatpush1.msra.mxu0 0.0
  %1650 = vmatprep.subr.mxu0 0.0
  %1651 = vmatpush1.msra.mxu0 0.0
  %1652 = vmatprep.mubr.f32.mxu0 0.0
  %1653 = vmatmul.mubr.f32.gmra.mrb[0].mxu0 %v1510
  %v1654 = vpop.f32.mrb[0].mxu0
  %v1655 = vadd.f32 0.0, %v1654
  %v1656 = vpop.f32.mrb[0].mxu0
  %1657 = vdwg.mxu0
  %v1658 = vadd.f32 %v1514, %v1584
  %v1659 = vxor.u32 %v1658, 2147483648
  %v1660 = vmul.f32 %v1659, 1.442695
  %v1661 = vpow.pop %v1660
  %v1662 = vadd.f32 %v1661, 1.0
  %v1663 = vrcp.pop %v1662
  %v1664 = vmul.f32 1.0, %v1663
  %v1665 = vadd.f32 %v1515, %v1586
  %v1666 = vxor.u32 %v1665, 2147483648
  %v1667 = vmul.f32 %v1666, 1.442695
  %v1668 = vpow.pop %v1667
  %v1669 = vadd.f32 %v1668, 1.0
  %v1670 = vrcp.pop %v1669
  %v1671 = vmul.f32 1.0, %v1670
  %v1672 = vadd.f32 %v1655, %v487
  %v1673 = vmul.f32 %v1664, %v1672
  %v1674 = vadd.f32 %v1516, %v1673
  %v1675 = vtanh.pop %v1674
  %v1676 = vsub.f32 1.0, %v1671
  %v1677 = vmul.f32 %v1676, %v1675
  %v1678 = vmul.f32 %v1671, %v1510
  %v1679 = vadd.f32 %v1677, %v1678
  %1680 = vst [vmem:[#allocation2] sm:$0xff] %v1679
  // Predicated region
  $region34: #{gencoder_forward.1} parent=0 // pred_check
    %p1681 = pneg %p27
  $region35: #{gencoder_forward.1} parent=0 // pred_check_branch
    %1683 = sbr.rel (%p1681) target = $region37
  $region36: #{gencoder_forward.1} parent=0 // pred_region
    %v1684 = vld [vmem:[#allocation2] sm:$0xff]
    %v1685 = vpack.c.bf16 %v1684, %v1684
    %v1686 = vld [vmem:[%s5] sm:$0xf]
    %v1687 = vld [vmem:[%s5 + $0x4] sm:$0xf]
    %v1688 = vld [vmem:[%s5 + $0x8] sm:$0xf]
    %v1689 = vld [vmem:[%s5 + $0xc] sm:$0xf]
    %v1690 = vld [vmem:[%s5 + $0x10] sm:$0xf]
    %v1691 = vld [vmem:[%s5 + $0x14] sm:$0xf]
    %v1692 = vld [vmem:[%s5 + $0x18] sm:$0xf]
    %v1693 = vld [vmem:[%s5 + $0x1c] sm:$0xf]
    %v1694 = vld [vmem:[%s5 + $0x20] sm:$0xf]
    %v1695 = vld [vmem:[%s5 + $0x24] sm:$0xf]
    %v1696 = vld [vmem:[%s5 + $0x28] sm:$0xf]
    %v1697 = vld [vmem:[%s5 + $0x2c] sm:$0xf]
    %v1698 = vld [vmem:[%s5 + $0x30] sm:$0xf]
    %v1699 = vld [vmem:[%s5 + $0x34] sm:$0xf]
    %v1700 = vld [vmem:[%s5 + $0x38] sm:$0xf]
    %v1701 = vld [vmem:[%s5 + $0x3c] sm:$0xf]
    %v1702 = vld [vmem:[%s6] sm:$0x1]
    %v1704 = vlaneseq
    %v1705 = vshrl.u32 %v1704, 7
    %v1706 = vsub.s32 0, %v1705
    %v1707 = vrot.slane %v1702, %v1706
    %v1725 = vunpack.c.l.b16 %v1686
    %v1726 = vunpack.c.l.b16 %v1687
    %v1727 = vunpack.c.l.b16 %v1688
    %v1728 = vunpack.c.l.b16 %v1689
    %v1729 = vunpack.c.l.b16 %v1690
    %v1730 = vunpack.c.l.b16 %v1691
    %v1731 = vunpack.c.l.b16 %v1692
    %v1732 = vunpack.c.l.b16 %v1693
    %v1733 = vunpack.c.l.b16 %v1694
    %v1734 = vunpack.c.l.b16 %v1695
    %v1735 = vunpack.c.l.b16 %v1696
    %v1736 = vunpack.c.l.b16 %v1697
    %v1737 = vunpack.c.l.b16 %v1698
    %v1738 = vunpack.c.l.b16 %v1699
    %v1739 = vunpack.c.l.b16 %v1700
    %v1740 = vunpack.c.l.b16 %v1701
    %v1741 = vpack.c.b16 %v1726, %v1725
    %v1742 = vpack.c.b16 %v1728, %v1727
    %v1743 = vpack.c.b16 %v1730, %v1729
    %v1744 = vpack.c.b16 %v1732, %v1731
    %v1745 = vpack.c.b16 %v1734, %v1733
    %v1746 = vpack.c.b16 %v1736, %v1735
    %v1747 = vpack.c.b16 %v1738, %v1737
    %v1748 = vpack.c.b16 %v1740, %v1739
    %1757 = vmatprep.subr.bf16.mxu0 0
    %1758 = vmatpush1.bf16.msra.mxu0 %v1741
    %1759 = vmatprep.subr.bf16.mxu0 0
    %1760 = vmatpush1.bf16.msra.mxu0 %v1742
    %1761 = vmatprep.subr.bf16.mxu0 0
    %1762 = vmatpush1.bf16.msra.mxu0 %v1743
    %1763 = vmatprep.subr.bf16.mxu0 0
    %1764 = vmatpush1.bf16.msra.mxu0 %v1744
    %1765 = vmatprep.subr.bf16.mxu0 0
    %1766 = vmatpush1.bf16.msra.mxu0 %v1745
    %1767 = vmatprep.subr.bf16.mxu0 0
    %1768 = vmatpush1.bf16.msra.mxu0 %v1746
    %1769 = vmatprep.subr.bf16.mxu0 0
    %1770 = vmatpush1.bf16.msra.mxu0 %v1747
    %1771 = vmatprep.subr.bf16.mxu0 0
    %1772 = vmatpush1.bf16.msra.mxu0 %v1748
    %1773 = vmatprep.subr.bf16.mxu0 0
    %1774 = vmatpush1.bf16.msra.mxu0 0
    %1775 = vmatprep.subr.bf16.mxu0 0
    %1776 = vmatpush1.bf16.msra.mxu0 0
    %1777 = vmatprep.subr.bf16.mxu0 0
    %1778 = vmatpush1.bf16.msra.mxu0 0
    %1779 = vmatprep.subr.bf16.mxu0 0
    %1780 = vmatpush1.bf16.msra.mxu0 0
    %1781 = vmatprep.subr.bf16.mxu0 0
    %1782 = vmatpush1.bf16.msra.mxu0 0
    %1783 = vmatprep.subr.bf16.mxu0 0
    %1784 = vmatpush1.bf16.msra.mxu0 0
    %1785 = vmatprep.subr.bf16.mxu0 0
    %1786 = vmatpush1.bf16.msra.mxu0 0
    %1787 = vmatprep.subr.bf16.mxu0 0
    %1788 = vmatpush1.bf16.msra.mxu0 0
    %1789 = vmatprep.mubr.bf16.mxu0 0
    %1790 = vmatmul.mubr.bf16.gmra.mrb[0].mxu0 %v1685
    %v1791 = vpop.f32.mrb[0].mxu0
    %v1792 = vadd.f32 %v1707, %v1791
    %v1793 = vpop.f32.mrb[0].mxu0
    %v1794 = vpop.f32.mrb[0].mxu0
    %v1795 = vpop.f32.mrb[0].mxu0
    %1796 = vdwg.mxu0
    %1797 = vst [vmem:[%s7] sm:$0xff] %v1792
  $region37: #{gencoder_forward.1} parent=0 // pred_fallthru
    _
  // Predicated region
  $region38: #{gencoder_forward.1} parent=0 // pred_check
    _
  $region39: #{gencoder_forward.1} parent=0 // pred_check_branch
    %1799 = sbr.rel (0) target = $region41
  $region40: #{gencoder_forward.1} parent=0 // pred_region
    _
  $region41: #{gencoder_forward.1} parent=0 // pred_fallthru
    _
  // Predicated region
  $region42: #{gencoder_forward.1} parent=0 // pred_check
    _
  $region43: #{gencoder_forward.1} parent=0 // pred_check_branch
    %1801 = sbr.rel (0) target = $region45
  $region44: #{gencoder_forward.1} parent=0 // pred_region
    _
  $region45: #{gencoder_forward.1} parent=0 // pred_fallthru
    _

</llo_original>
